<compile_context>
chip_gen: v7x
topology: tpu7x:2x2x1
jax: 0.10.0
libtpu: 0.0.40
codegen_flags: <defaults>
</compile_context>

<pallas_src>
import functools
import math

import jax
import jax.numpy as jnp
from jax import lax
from jax.experimental import pallas as pl
from jax.experimental.pallas import tpu as pltpu


def _ffm_kernel(x_ref, wpre_ref, bpre_ref, gpr_ref, gpi_ref,
                wmre_ref, wmim_ref, bmix_ref,
                out_ref, st_re_ref, st_im_ref,
                y_sc, thru_sc, og_sc, sre_sc, sim_sc,
                *, memory_size, output_size, context_half, chunk, eps):
    M = memory_size
    O = output_size
    C = context_half
    CM = C * M
    BT, TT, F = x_ref.shape
    U = chunk

    # Reset the cross-T-tile recurrence carry at the start of each batch tile.
    @pl.when(pl.program_id(1) == 0)
    def _():
        sre_sc[...] = jnp.zeros_like(sre_sc)
        sim_sc[...] = jnp.zeros_like(sim_sc)

    # ---- pre linear: ONE wide bf16 MXU matmul over the tile's tokens --------
    x2 = x_ref[...].reshape(BT * TT, F)
    h = jnp.dot(x2.astype(jnp.bfloat16), wpre_ref[...],
                preferred_element_type=jnp.float32) + bpre_ref[...]    # (BT*TT, P)
    gate = jax.nn.sigmoid(h[:, M + O:])
    # Spill gated drive / thru / out-gate to scratch so they are not live in
    # vregs across the recurrence loop.
    y_sc[...] = (h[:, :M] * gate[:, :M]).reshape(BT, TT, M)
    thru_sc[...] = h[:, M:M + O].reshape(BT, TT, O)
    og_sc[...] = gate[:, M:].reshape(BT, TT, O)

    gp_re = gpr_ref[...]          # (U, CM): row u = Re(gamma^(u+1)), lane c*M+m
    gp_im = gpi_ref[...]

    def shift_down(v, s):         # zero-fill the first s rows along the U axis
        z = jnp.zeros((BT, s, CM), jnp.float32)
        return jnp.concatenate([z, v[:, :U - s, :]], axis=1)

    n_chunks = TT // U

    def chunk_body(k, carry):
        s_re, s_im = carry                                      # (BT, CM)
        t0 = pl.multiple_of(k * U, U)
        yc = y_sc[:, pl.ds(t0, U), :]                           # (BT, U, M)
        # Broadcast the drive across the context axis (lane index = c*M + m).
        b_re = jnp.concatenate([yc] * C, axis=-1) if C > 1 else yc
        # In-chunk associative scan (depth ceil(log2(U))):
        #   B_u <- B_u + gamma^d * B_{u-d},  d = 1, 2, 4, ...
        if U > 1:
            sh = shift_down(b_re, 1)                            # b_im == 0 pass
            b_im = gp_im[None, 0:1, :] * sh
            b_re = b_re + gp_re[None, 0:1, :] * sh
            d = 2
            while d < U:
                gr = gp_re[None, d - 1:d, :]
                gi = gp_im[None, d - 1:d, :]
                sh_re = shift_down(b_re, d)
                sh_im = shift_down(b_im, d)
                b_re = b_re + gr * sh_re - gi * sh_im
                b_im = b_im + gr * sh_im + gi * sh_re
                d *= 2
        else:
            b_im = jnp.zeros_like(b_re)
        # Apply carried state: s_{t0+u} = gamma^(u+1) * s_carry + B_u.
        car_re = s_re[:, None, :]
        car_im = s_im[:, None, :]
        new_re = gp_re[None] * car_re - gp_im[None] * car_im + b_re
        new_im = gp_re[None] * car_im + gp_im[None] * car_re + b_im
        # One contiguous, sublane-aligned store per chunk, directly to output.
        st_re_ref[:, pl.ds(t0, U), :] = new_re
        st_im_ref[:, pl.ds(t0, U), :] = new_im
        return new_re[:, U - 1, :], new_im[:, U - 1, :]

    s_re, s_im = lax.fori_loop(0, n_chunks, chunk_body,
                               (sre_sc[...], sim_sc[...]))
    sre_sc[...] = s_re
    sim_sc[...] = s_im

    # ---- mix linear: two accumulated bf16 MXU dots (re / im halves) ---------
    # TODO(synk): for very long T the bf16 cast of the state LHS may need an
    # f32 fallback (state magnitude grows like 1/(1-|gamma|)).
    zr = jnp.dot(st_re_ref[...].reshape(BT * TT, CM).astype(jnp.bfloat16),
                 wmre_ref[...], preferred_element_type=jnp.float32)
    zi = jnp.dot(st_im_ref[...].reshape(BT * TT, CM).astype(jnp.bfloat16),
                 wmim_ref[...], preferred_element_type=jnp.float32)
    z = zr + zi + bmix_ref[...]                                  # (BT*TT, O)

    # ---- LayerNorm (no affine) + output gating -------------------------------
    mu = jnp.mean(z, axis=-1, keepdims=True)
    var = jnp.mean(jnp.square(z - mu), axis=-1, keepdims=True)
    ln = (z - mu) * lax.rsqrt(var + eps)
    og = og_sc[...].reshape(BT * TT, O)
    thru = thru_sc[...].reshape(BT * TT, O)
    out = ln * og + thru * (1.0 - og)
    out_ref[...] = out.reshape(BT, TT, O)


def _round_up(x, m):
    return (x + m - 1) // m * m


def _vmem_bytes(BT, TT, F, P, M, O, CM, U):
    """Rough per-grid-step VMEM estimate (blocks, weights, scratch, temps)."""
    blocks = 2 * 4 * BT * TT * (F + O + 2 * CM)           # dbl-buffered x/out/state
    weights = 2 * (2 * (F * P + 2 * CM * O) + 4 * (P + O + 2 * U * CM))
    scratch = 4 * (BT * TT * (M + 2 * O) + 2 * BT * CM)   # drive/thru/gate + carry
    temps = 4 * BT * TT * (P + O + CM) + 16 * BT * U * CM  # h, z, casts, scan regs
    return blocks + weights + scratch + temps


def make_params(key, input_size, memory_size, output_size, context_size,
                min_period=1.0, max_period=1024.0):
    """Deterministic synthetic parameters (shapes follow FFM.__init__)."""
    M, O = memory_size, output_size
    C = context_size // 2
    P = 2 * M + 2 * O
    k1, k2, k3, k4 = jax.random.split(key, 4)
    b_pre_bound = 1.0 / math.sqrt(input_size)
    w_pre = jax.random.uniform(k1, (P, input_size), jnp.float32,
                               -b_pre_bound, b_pre_bound)
    b_pre = jax.random.uniform(k2, (P,), jnp.float32, -b_pre_bound, b_pre_bound)
    mix_in = M * context_size
    b_mix_bound = 1.0 / math.sqrt(mix_in)
    w_mix = jax.random.uniform(k3, (O, mix_in), jnp.float32,
                               -b_mix_bound, b_mix_bound)
    b_mix = jax.random.uniform(k4, (O,), jnp.float32, -b_mix_bound, b_mix_bound)
    # TODO(synk): OuterLaplaceAggregation source not provided; using the
    # canonical FFM/FFA parameterization gamma[m,c] = exp(-|alpha[m]| + i*omega[c]).
    alpha = 1.0 / jnp.linspace(min_period, max_period, M).astype(jnp.float32)
    omega = (2.0 * math.pi /
             jnp.linspace(min_period, max_period, C).astype(jnp.float32))
    return dict(w_pre=w_pre, b_pre=b_pre, w_mix=w_mix, b_mix=b_mix,
                alpha=alpha, omega=omega)


def ffm_forward(x, params, memory_size, output_size, context_size,
                batch_tile=None, seq_tile=None, chunk=8):
    B, T, F = x.shape
    M, O = memory_size, output_size
    C = context_size // 2
    CM = C * M
    P = 2 * M + 2 * O

    # ---- sequence padding & tiling (layout-preserving reshapes, no tail) ----
    T_pad = _round_up(T, 8)
    if T_pad != T:
        x = jnp.pad(x, ((0, 0), (0, T_pad - T), (0, 0)))
    if seq_tile is None:
        if T_pad <= 256:
            TT = T_pad
        else:
            TT = 8
            for d in range(256, 7, -8):
                if T_pad % d == 0:
                    TT = d
                    break
    else:
        TT = seq_tile
    assert T_pad % TT == 0 and TT % 8 == 0
    U = min(chunk, TT)
    while TT % U:
        U -= 1

    # ---- generation-aware VMEM budget ----------------------------------------
    try:
        vmem_cap = int(getattr(pltpu.get_tpu_info(), "vmem_capacity_bytes",
                               64 * 2 ** 20))
    except Exception:
        vmem_cap = 64 * 2 ** 20                     # conservative (v7x per-TC)
    budget = int(0.85 * vmem_cap)

    # ---- batch tile: prefer multiple-of-8 (sublane-dense recurrence) and a
    # grid >= 2 on the megacore-parallel batch axis, within the VMEM budget ---
    if batch_tile is None:
        divisors = sorted([d for d in range(1, B + 1) if B % d == 0],
                          reverse=True)
        batch_tile = 1
        for want8, want_grid2 in ((True, True), (True, False),
                                  (False, True), (False, False)):
            picked = None
            for d in divisors:
                if want8 and d % 8:
                    continue
                if want_grid2 and B // d < 2:
                    continue
                if _vmem_bytes(d, TT, F, P, M, O, CM, U) > budget:
                    continue
                picked = d
                break
            if picked is not None:
                batch_tile = picked
                break
    BT = batch_tile
    assert B % BT == 0, "batch_tile must divide batch"

    # ---- parameter packing ----------------------------------------------------
    decay = jnp.exp(-jnp.abs(params["alpha"]))                          # (M,)
    gamma = (decay[None, :] *
             (jnp.cos(params["omega"])[:, None]
              + 1j * jnp.sin(params["omega"])[:, None])).astype(jnp.complex64)
    gamma_flat = gamma.reshape(CM)                                      # lane = c*M + m
    powers = jnp.cumprod(jnp.broadcast_to(gamma_flat, (U, CM)), axis=0)  # gamma^1..U
    g_pow_re = jnp.real(powers).astype(jnp.float32)
    g_pow_im = jnp.imag(powers).astype(jnp.float32)

    w_pre_t = params["w_pre"].T.astype(jnp.bfloat16)                    # (F, P)
    b_pre = params["b_pre"].reshape(1, P).astype(jnp.float32)
    # torch mix weight columns k = m*2C + 2c + r; split re/im halves and repack
    # rows to the kernel's lane order c*M + m.
    w4 = params["w_mix"].reshape(O, M, C, 2)
    w_mix_re = jnp.transpose(w4[..., 0], (2, 1, 0)).reshape(CM, O).astype(jnp.bfloat16)
    w_mix_im = jnp.transpose(w4[..., 1], (2, 1, 0)).reshape(CM, O).astype(jnp.bfloat16)
    b_mix = params["b_mix"].reshape(1, O).astype(jnp.float32)

    est = _vmem_bytes(BT, TT, F, P, M, O, CM, U)
    vmem_limit = int(min(budget, max(2 * est, 32 * 2 ** 20)))

    kernel = functools.partial(_ffm_kernel, memory_size=M, output_size=O,
                               context_half=C, chunk=U, eps=1e-5)

    out, st_re, st_im = pl.pallas_call(
        kernel,
        out_shape=(
            jax.ShapeDtypeStruct((B, T_pad, O), jnp.float32),
            jax.ShapeDtypeStruct((B, T_pad, CM), jnp.float32),  # Re(state), lane-dense
            jax.ShapeDtypeStruct((B, T_pad, CM), jnp.float32),  # Im(state), lane-dense
        ),
        grid_spec=pltpu.PrefetchScalarGridSpec(
            num_scalar_prefetch=0,
            grid=(B // BT, T_pad // TT),
            in_specs=[
                pl.BlockSpec((BT, TT, F), lambda b, t: (b, t, 0)),    # x
                pl.BlockSpec((F, P), lambda b, t: (0, 0)),            # W_pre^T (bf16)
                pl.BlockSpec((1, P), lambda b, t: (0, 0)),            # b_pre
                pl.BlockSpec((U, CM), lambda b, t: (0, 0)),           # Re(gamma^(1..U))
                pl.BlockSpec((U, CM), lambda b, t: (0, 0)),           # Im(gamma^(1..U))
                pl.BlockSpec((CM, O), lambda b, t: (0, 0)),           # W_mix re (bf16)
                pl.BlockSpec((CM, O), lambda b, t: (0, 0)),           # W_mix im (bf16)
                pl.BlockSpec((1, O), lambda b, t: (0, 0)),            # b_mix
            ],
            out_specs=[
                pl.BlockSpec((BT, TT, O), lambda b, t: (b, t, 0)),
                pl.BlockSpec((BT, TT, CM), lambda b, t: (b, t, 0)),
                pl.BlockSpec((BT, TT, CM), lambda b, t: (b, t, 0)),
            ],
            scratch_shapes=[
                pltpu.VMEM((BT, TT, M), jnp.float32),    # gated drive (un-replicated)
                pltpu.VMEM((BT, TT, O), jnp.float32),    # thru
                pltpu.VMEM((BT, TT, O), jnp.float32),    # out gate
                pltpu.VMEM((BT, CM), jnp.float32),       # carry Re (persists over T-tiles)
                pltpu.VMEM((BT, CM), jnp.float32),       # carry Im
            ],
        ),
        compiler_params=pltpu.CompilerParams(
            dimension_semantics=("parallel", "arbitrary"),
            vmem_limit_bytes=vmem_limit),
    )(x, w_pre_t, b_pre, g_pow_re, g_pow_im, w_mix_re, w_mix_im, b_mix)

    # Re-assemble torch-style complex state [B, T, memory, context//2].
    # TODO(synk): non-zero initial recurrent state not wired (torch default is
    # None -> zeros, which is what the kernel assumes).
    state = (st_re[:, :T].reshape(B, T, C, M)
             + 1j * st_im[:, :T].reshape(B, T, C, M)).astype(jnp.complex64)
    state = jnp.transpose(state, (0, 1, 3, 2))                        # (B, T, M, C)
    return out[:, :T], [state]


def ffm_reference(x, params, memory_size, output_size, context_size):
    """Pure-JAX reference mirroring the PyTorch forward."""
    M, O = memory_size, output_size
    C = context_size // 2
    B, T, _ = x.shape
    h = jnp.einsum("btf,pf->btp", x, params["w_pre"],
                   precision=lax.Precision.HIGHEST) + params["b_pre"]
    y = h[..., :M]
    thru = h[..., M:M + O]
    gate = jax.nn.sigmoid(h[..., M + O:])
    in_gate, out_gate = gate[..., :M], gate[..., M:]
    y = y * in_gate
    decay = jnp.exp(-jnp.abs(params["alpha"]))
    gamma = (decay[:, None]
             * (jnp.cos(params["omega"])[None, :]
                + 1j * jnp.sin(params["omega"])[None, :])).astype(jnp.complex64)

    def scan_one(y_b):
        def step(s, y_t):
            s = gamma * s + y_t[:, None].astype(jnp.complex64)
            return s, s
        _, states = lax.scan(step, jnp.zeros((M, C), jnp.complex64), y_b)
        return states                                                 # (T, M, C)

    states = jax.vmap(scan_one)(y)                                    # (B, T, M, C)
    flat = jnp.stack([states.real, states.imag], axis=-1).reshape(B, T, M * C * 2)
    z = jnp.einsum("btk,ok->bto", flat, params["w_mix"],
                   precision=lax.Precision.HIGHEST) + params["b_mix"]
    mu = jnp.mean(z, axis=-1, keepdims=True)
    var = jnp.mean(jnp.square(z - mu), axis=-1, keepdims=True)
    ln = (z - mu) * lax.rsqrt(var + 1e-5)
    out = ln * out_gate + thru * (1 - out_gate)
    return out, [states]


if __name__ == "__main__":
    B, T = 4, 8
    input_size, hidden_size = 16, 32   # hidden_size unused in forward (as in torch)
    memory_size, output_size, context_size = 8, 16, 8

    key = jax.random.PRNGKey(0)
    kx, kp = jax.random.split(key)
    x = jax.random.normal(kx, (B, T, input_size), jnp.float32)
    params = make_params(kp, input_size, memory_size, output_size, context_size)

    out, [state] = ffm_forward(x, params, memory_size, output_size, context_size)
    out = jax.block_until_ready(out)
    state = jax.block_until_ready(state)

    ref_out, [ref_state] = ffm_reference(x, params, memory_size, output_size,
                                         context_size)
    assert out.shape == (B, T, output_size)
    assert state.shape == (B, T, memory_size, context_size // 2)
    assert jnp.allclose(out, ref_out, rtol=2e-2, atol=2e-2), "output mismatch"
    assert jnp.allclose(state, ref_state, rtol=2e-2, atol=2e-2), "state mismatch"
    print("KERNEL_OK")
</pallas_src>

<mosaic_0001>
module attributes {stable_mosaic.version = 11 : i64} {
  func.func @_ffm_kernel(%arg0: i32, %arg1: i32, %arg2: memref<2x8x16xf32, #tpu.memory_space<vmem>>, %arg3: memref<16x48xbf16, #tpu.memory_space<vmem>>, %arg4: memref<1x48xf32, #tpu.memory_space<vmem>>, %arg5: memref<8x32xf32, #tpu.memory_space<vmem>>, %arg6: memref<8x32xf32, #tpu.memory_space<vmem>>, %arg7: memref<32x16xbf16, #tpu.memory_space<vmem>>, %arg8: memref<32x16xbf16, #tpu.memory_space<vmem>>, %arg9: memref<1x16xf32, #tpu.memory_space<vmem>>, %arg10: memref<2x8x16xf32, #tpu.memory_space<vmem>>, %arg11: memref<2x8x32xf32, #tpu.memory_space<vmem>>, %arg12: memref<2x8x32xf32, #tpu.memory_space<vmem>>, %arg13: memref<2x8x8xf32, #tpu.memory_space<vmem>>, %arg14: memref<2x8x16xf32, #tpu.memory_space<vmem>>, %arg15: memref<2x8x16xf32, #tpu.memory_space<vmem>>, %arg16: memref<2x32xf32, #tpu.memory_space<vmem>>, %arg17: memref<2x32xf32, #tpu.memory_space<vmem>>) attributes {dimension_semantics = [#tpu.dimension_semantics<parallel>, #tpu.dimension_semantics<arbitrary>], iteration_bounds = array<i64: 2, 1>, scalar_prefetch = 0 : i64, scratch_operands = 5 : i64, tpu.core_type = #tpu.core_type<tc>, window_params = [{transform_indices = @transform_0, window_bounds = array<i64: 2, 8, 16>}, {pipeline_mode = #tpu.pipeline_mode<synchronous>, transform_indices = @transform_1, window_bounds = array<i64: 16, 48>}, {pipeline_mode = #tpu.pipeline_mode<synchronous>, transform_indices = @transform_2, window_bounds = array<i64: 1, 48>}, {pipeline_mode = #tpu.pipeline_mode<synchronous>, transform_indices = @transform_3, window_bounds = array<i64: 8, 32>}, {pipeline_mode = #tpu.pipeline_mode<synchronous>, transform_indices = @transform_4, window_bounds = array<i64: 8, 32>}, {pipeline_mode = #tpu.pipeline_mode<synchronous>, transform_indices = @transform_5, window_bounds = array<i64: 32, 16>}, {pipeline_mode = #tpu.pipeline_mode<synchronous>, transform_indices = @transform_6, window_bounds = array<i64: 32, 16>}, {pipeline_mode = #tpu.pipeline_mode<synchronous>, transform_indices = @transform_7, window_bounds = array<i64: 1, 16>}, {transform_indices = @transform_8, window_bounds = array<i64: 2, 8, 16>}, {transform_indices = @transform_9, window_bounds = array<i64: 2, 8, 32>}, {transform_indices = @transform_10, window_bounds = array<i64: 2, 8, 32>}]} {
    %c0_i32 = arith.constant 0 : i32
    %0 = arith.cmpi eq, %arg1, %c0_i32 : i32
    %1 = arith.extui %0 : i1 to i32
    %c0_i32_0 = arith.constant 0 : i32
    %2 = arith.cmpi ne, %1, %c0_i32_0 : i32
    scf.if %2 {
      %cst_70 = arith.constant 0.000000e+00 : f32
      %168 = vector.broadcast %cst_70 : f32 to vector<2x32xf32>
      %c0_71 = arith.constant 0 : index
      %c0_72 = arith.constant 0 : index
      %169 = vector.load %arg16[%c0_71, %c0_72] : memref<2x32xf32, #tpu.memory_space<vmem>>, vector<2x32xf32>
      tpu.vector_store %arg16[%c0_71, %c0_72], %168 {strides = array<i32>} : memref<2x32xf32, #tpu.memory_space<vmem>>, vector<2x32xf32>,
      %cst_73 = arith.constant 0.000000e+00 : f32
      %170 = vector.broadcast %cst_73 : f32 to vector<2x32xf32>
      %c0_74 = arith.constant 0 : index
      %c0_75 = arith.constant 0 : index
      %171 = vector.load %arg17[%c0_74, %c0_75] : memref<2x32xf32, #tpu.memory_space<vmem>>, vector<2x32xf32>
      tpu.vector_store %arg17[%c0_74, %c0_75], %170 {strides = array<i32>} : memref<2x32xf32, #tpu.memory_space<vmem>>, vector<2x32xf32>,
    } else {
    }
    %c0 = arith.constant 0 : index
    %c0_1 = arith.constant 0 : index
    %c0_2 = arith.constant 0 : index
    %3 = vector.load %arg2[%c0, %c0_1, %c0_2] : memref<2x8x16xf32, #tpu.memory_space<vmem>>, vector<2x8x16xf32>
    %4 = vector.shape_cast %3 : vector<2x8x16xf32> to vector<16x16xf32>
    %5 = arith.truncf %4 : vector<16x16xf32> to vector<16x16xbf16>
    %c0_3 = arith.constant 0 : index
    %c0_4 = arith.constant 0 : index
    %6 = vector.load %arg3[%c0_3, %c0_4] : memref<16x48xbf16, #tpu.memory_space<vmem>>, vector<16x48xbf16>
    %cst = arith.constant dense<0.000000e+00> : vector<16x48xf32>
    %7 = tpu.matmul %5, %6, %cst {dimension_numbers = #tpu.dot_dimension_numbers<[1], [0], [0], [1], [0, 0, 1, 1], [], []>} : vector<16x16xbf16>, vector<16x48xbf16>, vector<16x48xf32> -> vector<16x48xf32>
    %c0_5 = arith.constant 0 : index
    %c0_6 = arith.constant 0 : index
    %8 = vector.load %arg4[%c0_5, %c0_6] : memref<1x48xf32, #tpu.memory_space<vmem>>, vector<1x48xf32>
    %9 = vector.broadcast %8 : vector<1x48xf32> to vector<16x48xf32>
    %10 = arith.addf %7, %9 : vector<16x48xf32>
    %11 = vector.extract_strided_slice %10 {offsets = [0, 24], sizes = [16, 24], strides = [1, 1]} : vector<16x48xf32> to vector<16x24xf32>
    %12 = arith.negf %11 : vector<16x24xf32>
    %13 = math.exp %12 : vector<16x24xf32>
    %cst_7 = arith.constant 1.000000e+00 : f32
    %14 = vector.broadcast %cst_7 : f32 to vector<16x24xf32>
    %15 = arith.addf %14, %13 : vector<16x24xf32>
    %16 = arith.divf %14, %15 : vector<16x24xf32>
    %17 = vector.extract_strided_slice %10 {offsets = [0, 0], sizes = [16, 8], strides = [1, 1]} : vector<16x48xf32> to vector<16x8xf32>
    %18 = vector.extract_strided_slice %16 {offsets = [0, 0], sizes = [16, 8], strides = [1, 1]} : vector<16x24xf32> to vector<16x8xf32>
    %19 = arith.mulf %17, %18 : vector<16x8xf32>
    %20 = vector.shape_cast %19 : vector<16x8xf32> to vector<2x8x8xf32>
    %c0_8 = arith.constant 0 : index
    %c0_9 = arith.constant 0 : index
    %c0_10 = arith.constant 0 : index
    %21 = vector.load %arg13[%c0_8, %c0_9, %c0_10] : memref<2x8x8xf32, #tpu.memory_space<vmem>>, vector<2x8x8xf32>
    tpu.vector_store %arg13[%c0_8, %c0_9, %c0_10], %20 {strides = array<i32>} : memref<2x8x8xf32, #tpu.memory_space<vmem>>, vector<2x8x8xf32>,
    %22 = vector.extract_strided_slice %10 {offsets = [0, 8], sizes = [16, 16], strides = [1, 1]} : vector<16x48xf32> to vector<16x16xf32>
    %23 = vector.shape_cast %22 : vector<16x16xf32> to vector<2x8x16xf32>
    %c0_11 = arith.constant 0 : index
    %c0_12 = arith.constant 0 : index
    %c0_13 = arith.constant 0 : index
    %24 = vector.load %arg14[%c0_11, %c0_12, %c0_13] : memref<2x8x16xf32, #tpu.memory_space<vmem>>, vector<2x8x16xf32>
    tpu.vector_store %arg14[%c0_11, %c0_12, %c0_13], %23 {strides = array<i32>} : memref<2x8x16xf32, #tpu.memory_space<vmem>>, vector<2x8x16xf32>,
    %25 = vector.extract_strided_slice %16 {offsets = [0, 8], sizes = [16, 16], strides = [1, 1]} : vector<16x24xf32> to vector<16x16xf32>
    %26 = vector.shape_cast %25 : vector<16x16xf32> to vector<2x8x16xf32>
    %c0_14 = arith.constant 0 : index
    %c0_15 = arith.constant 0 : index
    %c0_16 = arith.constant 0 : index
    %27 = vector.load %arg15[%c0_14, %c0_15, %c0_16] : memref<2x8x16xf32, #tpu.memory_space<vmem>>, vector<2x8x16xf32>
    tpu.vector_store %arg15[%c0_14, %c0_15, %c0_16], %26 {strides = array<i32>} : memref<2x8x16xf32, #tpu.memory_space<vmem>>, vector<2x8x16xf32>,
    %c0_17 = arith.constant 0 : index
    %c0_18 = arith.constant 0 : index
    %28 = vector.load %arg5[%c0_17, %c0_18] : memref<8x32xf32, #tpu.memory_space<vmem>>, vector<8x32xf32>
    %c0_19 = arith.constant 0 : index
    %c0_20 = arith.constant 0 : index
    %29 = vector.load %arg6[%c0_19, %c0_20] : memref<8x32xf32, #tpu.memory_space<vmem>>, vector<8x32xf32>
    %c0_21 = arith.constant 0 : index
    %c0_22 = arith.constant 0 : index
    %30 = vector.load %arg16[%c0_21, %c0_22] : memref<2x32xf32, #tpu.memory_space<vmem>>, vector<2x32xf32>
    %c0_23 = arith.constant 0 : index
    %c0_24 = arith.constant 0 : index
    %31 = vector.load %arg17[%c0_23, %c0_24] : memref<2x32xf32, #tpu.memory_space<vmem>>, vector<2x32xf32>
    %c0_i32_25 = arith.constant 0 : i32
    %c8_i32 = arith.constant 8 : i32
    %32 = arith.muli %c0_i32_25, %c8_i32 : i32
    %33 = tpu.assume_multiple %32, 8 : i32
    %c0_26 = arith.constant 0 : index
    %34 = arith.index_cast %33 : i32 to index
    %c0_27 = arith.constant 0 : index
    %35 = vector.load %arg13[%c0_26, %34, %c0_27] : memref<2x8x8xf32, #tpu.memory_space<vmem>>, vector<2x8x8xf32>
    %36 = tpu.concatenate %35, %35, %35, %35 in 2 : vector<2x8x8xf32>, vector<2x8x8xf32>, vector<2x8x8xf32>, vector<2x8x8xf32> -> vector<2x8x32xf32>
    %cst_28 = arith.constant 0.000000e+00 : f32
    %37 = vector.broadcast %cst_28 : f32 to vector<2x1x32xf32>
    %38 = vector.extract_strided_slice %36 {offsets = [0, 0, 0], sizes = [2, 7, 32], strides = [1, 1, 1]} : vector<2x8x32xf32> to vector<2x7x32xf32>
    %39 = tpu.concatenate %37, %38 in 1 : vector<2x1x32xf32>, vector<2x7x32xf32> -> vector<2x8x32xf32>
    %40 = vector.extract_strided_slice %29 {offsets = [0, 0], sizes = [1, 32], strides = [1, 1]} : vector<8x32xf32> to vector<1x32xf32>
    %41 = vector.shape_cast %40 : vector<1x32xf32> to vector<1x1x32xf32>
    %42 = vector.broadcast %41 : vector<1x1x32xf32> to vector<2x8x32xf32>
    %43 = arith.mulf %42, %39 : vector<2x8x32xf32>
    %44 = vector.extract_strided_slice %28 {offsets = [0, 0], sizes = [1, 32], strides = [1, 1]} : vector<8x32xf32> to vector<1x32xf32>
    %45 = vector.shape_cast %44 : vector<1x32xf32> to vector<1x1x32xf32>
    %46 = vector.broadcast %45 : vector<1x1x32xf32> to vector<2x8x32xf32>
    %47 = arith.mulf %46, %39 : vector<2x8x32xf32>
    %48 = arith.addf %36, %47 : vector<2x8x32xf32>
    %49 = vector.extract_strided_slice %28 {offsets = [1, 0], sizes = [1, 32], strides = [1, 1]} : vector<8x32xf32> to vector<1x32xf32>
    %50 = vector.shape_cast %49 : vector<1x32xf32> to vector<1x1x32xf32>
    %51 = vector.extract_strided_slice %29 {offsets = [1, 0], sizes = [1, 32], strides = [1, 1]} : vector<8x32xf32> to vector<1x32xf32>
    %52 = vector.shape_cast %51 : vector<1x32xf32> to vector<1x1x32xf32>
    %cst_29 = arith.constant 0.000000e+00 : f32
    %53 = vector.broadcast %cst_29 : f32 to vector<2x2x32xf32>
    %54 = vector.extract_strided_slice %48 {offsets = [0, 0, 0], sizes = [2, 6, 32], strides = [1, 1, 1]} : vector<2x8x32xf32> to vector<2x6x32xf32>
    %55 = tpu.concatenate %53, %54 in 1 : vector<2x2x32xf32>, vector<2x6x32xf32> -> vector<2x8x32xf32>
    %cst_30 = arith.constant 0.000000e+00 : f32
    %56 = vector.broadcast %cst_30 : f32 to vector<2x2x32xf32>
    %57 = vector.extract_strided_slice %43 {offsets = [0, 0, 0], sizes = [2, 6, 32], strides = [1, 1, 1]} : vector<2x8x32xf32> to vector<2x6x32xf32>
    %58 = tpu.concatenate %56, %57 in 1 : vector<2x2x32xf32>, vector<2x6x32xf32> -> vector<2x8x32xf32>
    %59 = vector.broadcast %50 : vector<1x1x32xf32> to vector<2x8x32xf32>
    %60 = arith.mulf %59, %55 : vector<2x8x32xf32>
    %61 = arith.addf %48, %60 : vector<2x8x32xf32>
    %62 = vector.broadcast %52 : vector<1x1x32xf32> to vector<2x8x32xf32>
    %63 = arith.mulf %62, %58 : vector<2x8x32xf32>
    %64 = arith.subf %61, %63 : vector<2x8x32xf32>
    %65 = vector.broadcast %50 : vector<1x1x32xf32> to vector<2x8x32xf32>
    %66 = arith.mulf %65, %58 : vector<2x8x32xf32>
    %67 = arith.addf %43, %66 : vector<2x8x32xf32>
    %68 = vector.broadcast %52 : vector<1x1x32xf32> to vector<2x8x32xf32>
    %69 = arith.mulf %68, %55 : vector<2x8x32xf32>
    %70 = arith.addf %67, %69 : vector<2x8x32xf32>
    %71 = vector.extract_strided_slice %28 {offsets = [3, 0], sizes = [1, 32], strides = [1, 1]} : vector<8x32xf32> to vector<1x32xf32>
    %72 = vector.shape_cast %71 : vector<1x32xf32> to vector<1x1x32xf32>
    %73 = vector.extract_strided_slice %29 {offsets = [3, 0], sizes = [1, 32], strides = [1, 1]} : vector<8x32xf32> to vector<1x32xf32>
    %74 = vector.shape_cast %73 : vector<1x32xf32> to vector<1x1x32xf32>
    %cst_31 = arith.constant 0.000000e+00 : f32
    %75 = vector.broadcast %cst_31 : f32 to vector<2x4x32xf32>
    %76 = vector.extract_strided_slice %64 {offsets = [0, 0, 0], sizes = [2, 4, 32], strides = [1, 1, 1]} : vector<2x8x32xf32> to vector<2x4x32xf32>
    %77 = tpu.concatenate %75, %76 in 1 : vector<2x4x32xf32>, vector<2x4x32xf32> -> vector<2x8x32xf32>
    %cst_32 = arith.constant 0.000000e+00 : f32
    %78 = vector.broadcast %cst_32 : f32 to vector<2x4x32xf32>
    %79 = vector.extract_strided_slice %70 {offsets = [0, 0, 0], sizes = [2, 4, 32], strides = [1, 1, 1]} : vector<2x8x32xf32> to vector<2x4x32xf32>
    %80 = tpu.concatenate %78, %79 in 1 : vector<2x4x32xf32>, vector<2x4x32xf32> -> vector<2x8x32xf32>
    %81 = vector.broadcast %72 : vector<1x1x32xf32> to vector<2x8x32xf32>
    %82 = arith.mulf %81, %77 : vector<2x8x32xf32>
    %83 = arith.addf %64, %82 : vector<2x8x32xf32>
    %84 = vector.broadcast %74 : vector<1x1x32xf32> to vector<2x8x32xf32>
    %85 = arith.mulf %84, %80 : vector<2x8x32xf32>
    %86 = arith.subf %83, %85 : vector<2x8x32xf32>
    %87 = vector.broadcast %72 : vector<1x1x32xf32> to vector<2x8x32xf32>
    %88 = arith.mulf %87, %80 : vector<2x8x32xf32>
    %89 = arith.addf %70, %88 : vector<2x8x32xf32>
    %90 = vector.broadcast %74 : vector<1x1x32xf32> to vector<2x8x32xf32>
    %91 = arith.mulf %90, %77 : vector<2x8x32xf32>
    %92 = arith.addf %89, %91 : vector<2x8x32xf32>
    %93 = vector.shape_cast %30 : vector<2x32xf32> to vector<2x1x32xf32>
    %94 = vector.shape_cast %31 : vector<2x32xf32> to vector<2x1x32xf32>
    %95 = vector.shape_cast %28 : vector<8x32xf32> to vector<1x8x32xf32>
    %96 = vector.broadcast %95 : vector<1x8x32xf32> to vector<2x8x32xf32>
    %97 = vector.broadcast %93 : vector<2x1x32xf32> to vector<2x8x32xf32>
    %98 = arith.mulf %96, %97 : vector<2x8x32xf32>
    %99 = vector.shape_cast %29 : vector<8x32xf32> to vector<1x8x32xf32>
    %100 = vector.broadcast %99 : vector<1x8x32xf32> to vector<2x8x32xf32>
    %101 = vector.broadcast %94 : vector<2x1x32xf32> to vector<2x8x32xf32>
    %102 = arith.mulf %100, %101 : vector<2x8x32xf32>
    %103 = arith.subf %98, %102 : vector<2x8x32xf32>
    %104 = arith.addf %103, %86 : vector<2x8x32xf32>
    %105 = vector.shape_cast %28 : vector<8x32xf32> to vector<1x8x32xf32>
    %106 = vector.broadcast %105 : vector<1x8x32xf32> to vector<2x8x32xf32>
    %107 = vector.broadcast %94 : vector<2x1x32xf32> to vector<2x8x32xf32>
    %108 = arith.mulf %106, %107 : vector<2x8x32xf32>
    %109 = vector.shape_cast %29 : vector<8x32xf32> to vector<1x8x32xf32>
    %110 = vector.broadcast %109 : vector<1x8x32xf32> to vector<2x8x32xf32>
    %111 = vector.broadcast %93 : vector<2x1x32xf32> to vector<2x8x32xf32>
    %112 = arith.mulf %110, %111 : vector<2x8x32xf32>
    %113 = arith.addf %108, %112 : vector<2x8x32xf32>
    %114 = arith.addf %113, %92 : vector<2x8x32xf32>
    %c0_33 = arith.constant 0 : index
    %115 = arith.index_cast %33 : i32 to index
    %c0_34 = arith.constant 0 : index
    %116 = vector.load %arg11[%c0_33, %115, %c0_34] : memref<2x8x32xf32, #tpu.memory_space<vmem>>, vector<2x8x32xf32>
    tpu.vector_store %arg11[%c0_33, %115, %c0_34], %104 {strides = array<i32>} : memref<2x8x32xf32, #tpu.memory_space<vmem>>, vector<2x8x32xf32>,
    %c0_35 = arith.constant 0 : index
    %117 = arith.index_cast %33 : i32 to index
    %c0_36 = arith.constant 0 : index
    %118 = vector.load %arg12[%c0_35, %117, %c0_36] : memref<2x8x32xf32, #tpu.memory_space<vmem>>, vector<2x8x32xf32>
    tpu.vector_store %arg12[%c0_35, %117, %c0_36], %114 {strides = array<i32>} : memref<2x8x32xf32, #tpu.memory_space<vmem>>, vector<2x8x32xf32>,
    %119 = vector.extract_strided_slice %104 {offsets = [0, 7, 0], sizes = [2, 1, 32], strides = [1, 1, 1]} : vector<2x8x32xf32> to vector<2x1x32xf32>
    %120 = vector.shape_cast %119 : vector<2x1x32xf32> to vector<2x32xf32>
    %121 = vector.extract_strided_slice %114 {offsets = [0, 7, 0], sizes = [2, 1, 32], strides = [1, 1, 1]} : vector<2x8x32xf32> to vector<2x1x32xf32>
    %122 = vector.shape_cast %121 : vector<2x1x32xf32> to vector<2x32xf32>
    %c1_i32 = arith.constant 1 : i32
    %c0_37 = arith.constant 0 : index
    %c0_38 = arith.constant 0 : index
    %123 = vector.load %arg16[%c0_37, %c0_38] : memref<2x32xf32, #tpu.memory_space<vmem>>, vector<2x32xf32>
    tpu.vector_store %arg16[%c0_37, %c0_38], %120 {strides = array<i32>} : memref<2x32xf32, #tpu.memory_space<vmem>>, vector<2x32xf32>,
    %c0_39 = arith.constant 0 : index
    %c0_40 = arith.constant 0 : index
    %124 = vector.load %arg17[%c0_39, %c0_40] : memref<2x32xf32, #tpu.memory_space<vmem>>, vector<2x32xf32>
    tpu.vector_store %arg17[%c0_39, %c0_40], %122 {strides = array<i32>} : memref<2x32xf32, #tpu.memory_space<vmem>>, vector<2x32xf32>,
    %c0_41 = arith.constant 0 : index
    %c0_42 = arith.constant 0 : index
    %c0_43 = arith.constant 0 : index
    %125 = vector.load %arg11[%c0_41, %c0_42, %c0_43] : memref<2x8x32xf32, #tpu.memory_space<vmem>>, vector<2x8x32xf32>
    %126 = vector.shape_cast %125 : vector<2x8x32xf32> to vector<16x32xf32>
    %127 = arith.truncf %126 : vector<16x32xf32> to vector<16x32xbf16>
    %c0_44 = arith.constant 0 : index
    %c0_45 = arith.constant 0 : index
    %128 = vector.load %arg7[%c0_44, %c0_45] : memref<32x16xbf16, #tpu.memory_space<vmem>>, vector<32x16xbf16>
    %cst_46 = arith.constant dense<0.000000e+00> : vector<16x16xf32>
    %129 = tpu.matmul %127, %128, %cst_46 {dimension_numbers = #tpu.dot_dimension_numbers<[1], [0], [0], [1], [0, 0, 1, 1], [], []>} : vector<16x32xbf16>, vector<32x16xbf16>, vector<16x16xf32> -> vector<16x16xf32>
    %c0_47 = arith.constant 0 : index
    %c0_48 = arith.constant 0 : index
    %c0_49 = arith.constant 0 : index
    %130 = vector.load %arg12[%c0_47, %c0_48, %c0_49] : memref<2x8x32xf32, #tpu.memory_space<vmem>>, vector<2x8x32xf32>
    %131 = vector.shape_cast %130 : vector<2x8x32xf32> to vector<16x32xf32>
    %132 = arith.truncf %131 : vector<16x32xf32> to vector<16x32xbf16>
    %c0_50 = arith.constant 0 : index
    %c0_51 = arith.constant 0 : index
    %133 = vector.load %arg8[%c0_50, %c0_51] : memref<32x16xbf16, #tpu.memory_space<vmem>>, vector<32x16xbf16>
    %cst_52 = arith.constant dense<0.000000e+00> : vector<16x16xf32>
    %134 = tpu.matmul %132, %133, %cst_52 {dimension_numbers = #tpu.dot_dimension_numbers<[1], [0], [0], [1], [0, 0, 1, 1], [], []>} : vector<16x32xbf16>, vector<32x16xbf16>, vector<16x16xf32> -> vector<16x16xf32>
    %135 = arith.addf %129, %134 : vector<16x16xf32>
    %c0_53 = arith.constant 0 : index
    %c0_54 = arith.constant 0 : index
    %136 = vector.load %arg9[%c0_53, %c0_54] : memref<1x16xf32, #tpu.memory_space<vmem>>, vector<1x16xf32>
    %137 = vector.broadcast %136 : vector<1x16xf32> to vector<16x16xf32>
    %138 = arith.addf %135, %137 : vector<16x16xf32>
    %cst_55 = arith.constant dense<0.000000e+00> : vector<16xf32>
    %139 = vector.multi_reduction <add>, %138, %cst_55 [1] : vector<16x16xf32> to vector<16xf32>
    %140 = vector.shape_cast %139 : vector<16xf32> to vector<16x1xf32>
    %cst_56 = arith.constant 1.600000e+01 : f32
    %141 = vector.broadcast %cst_56 : f32 to vector<16x1xf32>
    %142 = arith.divf %140, %141 : vector<16x1xf32>
    %143 = vector.broadcast %142 : vector<16x1xf32> to vector<16x16xf32>
    %144 = arith.subf %138, %143 : vector<16x16xf32>
    %145 = arith.mulf %144, %144 : vector<16x16xf32>
    %cst_57 = arith.constant dense<0.000000e+00> : vector<16xf32>
    %146 = vector.multi_reduction <add>, %145, %cst_57 [1] : vector<16x16xf32> to vector<16xf32>
    %147 = vector.shape_cast %146 : vector<16xf32> to vector<16x1xf32>
    %cst_58 = arith.constant 1.600000e+01 : f32
    %148 = vector.broadcast %cst_58 : f32 to vector<16x1xf32>
    %149 = arith.divf %147, %148 : vector<16x1xf32>
    %150 = vector.broadcast %142 : vector<16x1xf32> to vector<16x16xf32>
    %151 = arith.subf %138, %150 : vector<16x16xf32>
    %cst_59 = arith.constant 9.99999974E-6 : f32
    %152 = vector.broadcast %cst_59 : f32 to vector<16x1xf32>
    %153 = arith.addf %149, %152 : vector<16x1xf32>
    %154 = math.rsqrt %153 : vector<16x1xf32>
    %155 = vector.broadcast %154 : vector<16x1xf32> to vector<16x16xf32>
    %156 = arith.mulf %151, %155 : vector<16x16xf32>
    %c0_60 = arith.constant 0 : index
    %c0_61 = arith.constant 0 : index
    %c0_62 = arith.constant 0 : index
    %157 = vector.load %arg15[%c0_60, %c0_61, %c0_62] : memref<2x8x16xf32, #tpu.memory_space<vmem>>, vector<2x8x16xf32>
    %158 = vector.shape_cast %157 : vector<2x8x16xf32> to vector<16x16xf32>
    %c0_63 = arith.constant 0 : index
    %c0_64 = arith.constant 0 : index
    %c0_65 = arith.constant 0 : index
    %159 = vector.load %arg14[%c0_63, %c0_64, %c0_65] : memref<2x8x16xf32, #tpu.memory_space<vmem>>, vector<2x8x16xf32>
    %160 = vector.shape_cast %159 : vector<2x8x16xf32> to vector<16x16xf32>
    %161 = arith.mulf %156, %158 : vector<16x16xf32>
    %cst_66 = arith.constant 1.000000e+00 : f32
    %162 = vector.broadcast %cst_66 : f32 to vector<16x16xf32>
    %163 = arith.subf %162, %158 : vector<16x16xf32>
    %164 = arith.mulf %160, %163 : vector<16x16xf32>
    %165 = arith.addf %161, %164 : vector<16x16xf32>
    %166 = vector.shape_cast %165 : vector<16x16xf32> to vector<2x8x16xf32>
    %c0_67 = arith.constant 0 : index
    %c0_68 = arith.constant 0 : index
    %c0_69 = arith.constant 0 : index
    %167 = vector.load %arg10[%c0_67, %c0_68, %c0_69] : memref<2x8x16xf32, #tpu.memory_space<vmem>>, vector<2x8x16xf32>
    tpu.vector_store %arg10[%c0_67, %c0_68, %c0_69], %166 {strides = array<i32>} : memref<2x8x16xf32, #tpu.memory_space<vmem>>, vector<2x8x16xf32>,
    return
  }
  func.func @transform_0(%arg0: i32, %arg1: i32) -> (i32, i32, i32) {
    %c0_i32 = arith.constant 0 : i32
    %c0_i32_0 = arith.constant 0 : i32
    return %arg0, %arg1, %c0_i32 : i32, i32, i32
  }
  func.func @transform_1(%arg0: i32, %arg1: i32) -> (i32, i32) {
    %c0_i32 = arith.constant 0 : i32
    %c0_i32_0 = arith.constant 0 : i32
    %c0_i32_1 = arith.constant 0 : i32
    return %c0_i32, %c0_i32_0 : i32, i32
  }
  func.func @transform_2(%arg0: i32, %arg1: i32) -> (i32, i32) {
    %c0_i32 = arith.constant 0 : i32
    %c0_i32_0 = arith.constant 0 : i32
    %c0_i32_1 = arith.constant 0 : i32
    return %c0_i32, %c0_i32_0 : i32, i32
  }
  func.func @transform_3(%arg0: i32, %arg1: i32) -> (i32, i32) {
    %c0_i32 = arith.constant 0 : i32
    %c0_i32_0 = arith.constant 0 : i32
    %c0_i32_1 = arith.constant 0 : i32
    return %c0_i32, %c0_i32_0 : i32, i32
  }
  func.func @transform_4(%arg0: i32, %arg1: i32) -> (i32, i32) {
    %c0_i32 = arith.constant 0 : i32
    %c0_i32_0 = arith.constant 0 : i32
    %c0_i32_1 = arith.constant 0 : i32
    return %c0_i32, %c0_i32_0 : i32, i32
  }
  func.func @transform_5(%arg0: i32, %arg1: i32) -> (i32, i32) {
    %c0_i32 = arith.constant 0 : i32
    %c0_i32_0 = arith.constant 0 : i32
    %c0_i32_1 = arith.constant 0 : i32
    return %c0_i32, %c0_i32_0 : i32, i32
  }
  func.func @transform_6(%arg0: i32, %arg1: i32) -> (i32, i32) {
    %c0_i32 = arith.constant 0 : i32
    %c0_i32_0 = arith.constant 0 : i32
    %c0_i32_1 = arith.constant 0 : i32
    return %c0_i32, %c0_i32_0 : i32, i32
  }
  func.func @transform_7(%arg0: i32, %arg1: i32) -> (i32, i32) {
    %c0_i32 = arith.constant 0 : i32
    %c0_i32_0 = arith.constant 0 : i32
    %c0_i32_1 = arith.constant 0 : i32
    return %c0_i32, %c0_i32_0 : i32, i32
  }
  func.func @transform_8(%arg0: i32, %arg1: i32) -> (i32, i32, i32) {
    %c0_i32 = arith.constant 0 : i32
    %c0_i32_0 = arith.constant 0 : i32
    return %arg0, %arg1, %c0_i32 : i32, i32, i32
  }
  func.func @transform_9(%arg0: i32, %arg1: i32) -> (i32, i32, i32) {
    %c0_i32 = arith.constant 0 : i32
    %c0_i32_0 = arith.constant 0 : i32
    return %arg0, %arg1, %c0_i32 : i32, i32, i32
  }
  func.func @transform_10(%arg0: i32, %arg1: i32) -> (i32, i32, i32) {
    %c0_i32 = arith.constant 0 : i32
    %c0_i32_0 = arith.constant 0 : i32
    return %arg0, %arg1, %c0_i32 : i32, i32, i32
  }
}

</mosaic_0001>

<llo_original>
// kernel: tpu_custom_call.1
$region0: #{tpu_custom_call.1}
  #allocation0 [shape = 'u32[]', space=smem, size = 0x4, offset = 0x4, fixed_abs, tag = 'smem constant byte address 0x4 - core index']
  #allocation1 [shape = 'u32[144,128]{1,0:T(1,128)}', space=vmem, size = 0x12000, scoped, tag = 'internal scratch']
  #allocation2 [shape = 'f32[2,8,8]{2,1,0:T(8,128)}', space=vmem, size = 0x2000, scoped, tag = 'scratch operand']
  #allocation3 [shape = 'f32[2,8,16]{2,1,0:T(8,128)}', space=vmem, size = 0x2000, scoped, tag = 'scratch operand']
  #allocation4 [shape = 'f32[2,8,16]{2,1,0:T(8,128)}', space=vmem, size = 0x2000, scoped, tag = 'scratch operand']
  #allocation5 [shape = 'f32[2,32]{1,0:T(2,128)}', space=vmem, size = 0x400, scoped, tag = 'scratch operand']
  #allocation6 [shape = 'f32[2,32]{1,0:T(2,128)}', space=vmem, size = 0x400, scoped, tag = 'scratch operand']
  %s0 = inlined_call_operand.vmem [shape: f32[4,8,16], index: 0, kind: input, shape index: {}]
  %s1 = inlined_call_operand.vmem [shape: bf16[16,48], index: 1, kind: input, shape index: {}]
  %s2 = inlined_call_operand.vmem [shape: f32[1,48], index: 2, kind: input, shape index: {}]
  %s3 = inlined_call_operand.hbm [shape: f32[8,32], index: 3, kind: input, shape index: {}]
  %s4 = inlined_call_operand.hbm [shape: f32[8,32], index: 4, kind: input, shape index: {}]
  %s5 = inlined_call_operand.vmem [shape: bf16[32,16], index: 5, kind: input, shape index: {}]
  %s6 = inlined_call_operand.vmem [shape: bf16[32,16], index: 6, kind: input, shape index: {}]
  %s7 = inlined_call_operand.vmem [shape: f32[1,16], index: 7, kind: input, shape index: {}]
  %s8 = inlined_call_operand.hbm [shape: f32[4,8,16], index: 8, kind: output, shape index: {0}]
  %s9 = inlined_call_operand.hbm [shape: f32[4,8,32], index: 9, kind: output, shape index: {1}]
  %s10 = inlined_call_operand.hbm [shape: f32[4,8,32], index: 10, kind: output, shape index: {2}]
  %11 = xla_tuple %s8, %s9, %s10
  %s12 = sld [smem:[#allocation0]]
  $region93: #{tpu_custom_call.1} parent=0
    _
  %s14 = ssub.s32 1, %s12
  %s15 = scalar_select 0, %s14, %s12
  $region1: #{tpu_custom_call.1} parent=0
    #allocation7 [shape = 'u8[4096]{0}', space=vmem, size = 0x1000, scoped, tag = 'input window, operand 3, single buffered']
    #allocation8 [shape = 's32[2]{0}', space=sflag, size = 0x8, scoped, tag = 'scoped memory for tpu_custom_call.1']
    #allocation9 [shape = 's32[2]{0}', space=sflag, size = 0x8, scoped, tag = 'scoped memory for tpu_custom_call.1']
    #allocation10 [shape = 'u8[4096]{0}', space=vmem, size = 0x1000, scoped, tag = 'input window, operand 4, single buffered']
    #allocation11 [shape = 's32[1]{0}', space=sflag, size = 0x4, scoped, tag = 'scoped memory for tpu_custom_call.1']
    #allocation12 [shape = 'u8[16384]{0}', space=vmem, size = 0x4000, scoped, tag = 'output window, operand 0']
    #allocation13 [shape = 'u8[16384]{0}', space=vmem, size = 0x4000, scoped, tag = 'output window, operand 1']
    #allocation14 [shape = 's32[2]{0}', space=sflag, size = 0x8, scoped, tag = 'scoped memory for tpu_custom_call.1']
    #allocation15 [shape = 'u8[16384]{0}', space=vmem, size = 0x4000, scoped, tag = 'output window, operand 2']
    %16 = vsyncpa [#allocation8], 0
    %17 = vsyncpa [#allocation11], 0
    %18 = vsyncpa [#allocation9], 0
    %s19 = scalar_lea.sflag [#allocation9], 1
    %20 = vsyncpa %s19, 0
    %21 = vsyncpa [#allocation14], 0
    %s22 = scalar_lea.sflag [#allocation14], 1
    %23 = vsyncpa %s22, 0
    loop: start=0, step=1, limit=4
    $region2: #{tpu_custom_call.1} parent=1 // loop_pre_header
      _
    $region3: #{tpu_custom_call.1} parent=1 // loop_header
      %s25 = sphi 0, %s29
      %p26 = scmp.ge.s32.totalorder %s25, 4
      %s32 = sphi 0, %s44
      %s33 = sphi 0, %s40
      %s34 = sphi 0, %s32
      %s35 = sphi 0, %s33
      %s36 = sphi 0, %s34
      %s37 = sphi 0, %s35
      %s49 = sphi 0, %s51
      %s52 = sphi 0, %s49
      %s53 = sphi 0, %s52
      %s69 = sphi 0, %s53
      %s73 = sphi 0, %s73
      %s75 = sphi 0, %s73
      %s76 = sphi 0, %s75
      %s90 = sphi 0, %s76
      %s94 = sphi 0, %s94
      %s96 = sphi 0, %s94
      %s97 = sphi 0, %s96
      %s111 = sphi 0, %s97
      %s115 = sphi 0, %s115
      %s117 = sphi 0, %s115
      %s118 = sphi 0, %s117
      %s132 = sphi 0, %s118
      %s136 = sphi 0, %s136
      %s138 = sphi 0, %s136
      %s139 = sphi 0, %s138
      %s153 = sphi 0, %s139
      %s157 = sphi 0, %s157
      %s159 = sphi 0, %s157
      %s160 = sphi 0, %s159
      %s174 = sphi 0, %s160
      %s178 = sphi 0, %s178
      %s180 = sphi 0, %s178
      %s181 = sphi 0, %s180
      %s195 = sphi 0, %s181
      %s199 = sphi 0, %s199
      %s201 = sphi 0, %s199
      %s202 = sphi 0, %s201
      %s216 = sphi 0, %s202
      %s224 = sphi 0, %s226
      %s227 = sphi 0, %s224
      %s228 = sphi 0, %s227
      %s244 = sphi 0, %s228
      %s252 = sphi 0, %s254
      %s255 = sphi 0, %s252
      %s256 = sphi 0, %s255
      %s272 = sphi 0, %s256
      %s280 = sphi 0, %s282
      %s283 = sphi 0, %s280
      %s284 = sphi 0, %s283
      %s300 = sphi 0, %s284
    $region4: #{tpu_custom_call.1} parent=1 // loop_header_branch
      %28 = sbr.rel (%p26) target = $region8
    $region5: #{tpu_custom_call.1} parent=1 // loop_body
      %s30 = ssub.s32 %s25, 1
      %s31 = ssub.s32 %s25, 2
      %s38 = sadd.s32 1, %s33
      %p39 = scmp.ge.s32.totalorder %s38, 1
      %s40 = scalar_select %p39, 0, %s38
      %s41 = sadd.s32 1, %s32
      %s42 = scalar_select %p39, %s41, %s32
      %p43 = scmp.ge.s32.totalorder %s42, 2
      %s44 = scalar_select %p43, 0, %s42
      %s45 = ssub.s32 %s32, %s44
      %s46 = ssub.s32 %s33, %s40
      %s47 = sor.u32 %s45, %s46
      %p48 = scmp.eq.s32.totalorder %s47, 0
      %s50 = sadd.s32 %s49, 1
      %s51 = scalar_select %p48, %s49, %s50
      %p54 = pneg %p48
      %p55 = scmp.eq.s32.totalorder %s25, 1
      %p56 = por %p54, %p55
      %p57 = scmp.ne.s32.totalorder %s49, %s52
      %p58 = scmp.eq.s32.totalorder %s25, 0
      %p59 = por %p57, %p58
      %p60 = scmp.ne.s32.totalorder %s49, %s52
      %p61 = scmp.eq.s32.totalorder %s30, 1
      %p62 = por %p60, %p61
      %p63 = scmp.ne.s32.totalorder %s52, %s53
      %p64 = scmp.eq.s32.totalorder %s30, 0
      %p65 = por %p63, %p64
      %p66 = scmp.ne.s32.totalorder %s52, %s53
      %p67 = scmp.eq.s32.totalorder %s31, 1
      %p68 = por %p66, %p67
      %p70 = scmp.ne.s32.totalorder %s53, %s69
      %p71 = scmp.eq.s32.totalorder %s31, 0
      %p72 = por %p70, %p71
      %s74 = sadd.s32 %s73, 1
      %p77 = scmp.eq.s32.totalorder %s25, 1
      %p78 = scmp.ne.s32.totalorder %s73, %s75
      %p79 = scmp.eq.s32.totalorder %s25, 0
      %p80 = por %p78, %p79
      %p81 = scmp.ne.s32.totalorder %s73, %s75
      %p82 = scmp.eq.s32.totalorder %s30, 1
      %p83 = por %p81, %p82
      %p84 = scmp.ne.s32.totalorder %s75, %s76
      %p85 = scmp.eq.s32.totalorder %s30, 0
      %p86 = por %p84, %p85
      %p87 = scmp.ne.s32.totalorder %s75, %s76
      %p88 = scmp.eq.s32.totalorder %s31, 1
      %p89 = por %p87, %p88
      %p91 = scmp.ne.s32.totalorder %s76, %s90
      %p92 = scmp.eq.s32.totalorder %s31, 0
      %p93 = por %p91, %p92
      %s95 = sadd.s32 %s94, 1
      %p98 = scmp.eq.s32.totalorder %s25, 1
      %p99 = scmp.ne.s32.totalorder %s94, %s96
      %p100 = scmp.eq.s32.totalorder %s25, 0
      %p101 = por %p99, %p100
      %p102 = scmp.ne.s32.totalorder %s94, %s96
      %p103 = scmp.eq.s32.totalorder %s30, 1
      %p104 = por %p102, %p103
      %p105 = scmp.ne.s32.totalorder %s96, %s97
      %p106 = scmp.eq.s32.totalorder %s30, 0
      %p107 = por %p105, %p106
      %p108 = scmp.ne.s32.totalorder %s96, %s97
      %p109 = scmp.eq.s32.totalorder %s31, 1
      %p110 = por %p108, %p109
      %p112 = scmp.ne.s32.totalorder %s97, %s111
      %p113 = scmp.eq.s32.totalorder %s31, 0
      %p114 = por %p112, %p113
      %s116 = sadd.s32 %s115, 1
      %p119 = scmp.eq.s32.totalorder %s25, 1
      %p120 = scmp.ne.s32.totalorder %s115, %s117
      %p121 = scmp.eq.s32.totalorder %s25, 0
      %p122 = por %p120, %p121
      %p123 = scmp.ne.s32.totalorder %s115, %s117
      %p124 = scmp.eq.s32.totalorder %s30, 1
      %p125 = por %p123, %p124
      %p126 = scmp.ne.s32.totalorder %s117, %s118
      %p127 = scmp.eq.s32.totalorder %s30, 0
      %p128 = por %p126, %p127
      %p129 = scmp.ne.s32.totalorder %s117, %s118
      %p130 = scmp.eq.s32.totalorder %s31, 1
      %p131 = por %p129, %p130
      %p133 = scmp.ne.s32.totalorder %s118, %s132
      %p134 = scmp.eq.s32.totalorder %s31, 0
      %p135 = por %p133, %p134
      %s137 = sadd.s32 %s136, 1
      %p140 = scmp.eq.s32.totalorder %s25, 1
      %p141 = scmp.ne.s32.totalorder %s136, %s138
      %p142 = scmp.eq.s32.totalorder %s25, 0
      %p143 = por %p141, %p142
      %p144 = scmp.ne.s32.totalorder %s136, %s138
      %p145 = scmp.eq.s32.totalorder %s30, 1
      %p146 = por %p144, %p145
      %p147 = scmp.ne.s32.totalorder %s138, %s139
      %p148 = scmp.eq.s32.totalorder %s30, 0
      %p149 = por %p147, %p148
      %p150 = scmp.ne.s32.totalorder %s138, %s139
      %p151 = scmp.eq.s32.totalorder %s31, 1
      %p152 = por %p150, %p151
      %p154 = scmp.ne.s32.totalorder %s139, %s153
      %p155 = scmp.eq.s32.totalorder %s31, 0
      %p156 = por %p154, %p155
      %s158 = sadd.s32 %s157, 1
      %p161 = scmp.eq.s32.totalorder %s25, 1
      %p162 = scmp.ne.s32.totalorder %s157, %s159
      %p163 = scmp.eq.s32.totalorder %s25, 0
      %p164 = por %p162, %p163
      %p165 = scmp.ne.s32.totalorder %s157, %s159
      %p166 = scmp.eq.s32.totalorder %s30, 1
      %p167 = por %p165, %p166
      %p168 = scmp.ne.s32.totalorder %s159, %s160
      %p169 = scmp.eq.s32.totalorder %s30, 0
      %p170 = por %p168, %p169
      %p171 = scmp.ne.s32.totalorder %s159, %s160
      %p172 = scmp.eq.s32.totalorder %s31, 1
      %p173 = por %p171, %p172
      %p175 = scmp.ne.s32.totalorder %s160, %s174
      %p176 = scmp.eq.s32.totalorder %s31, 0
      %p177 = por %p175, %p176
      %s179 = sadd.s32 %s178, 1
      %p182 = scmp.eq.s32.totalorder %s25, 1
      %p183 = scmp.ne.s32.totalorder %s178, %s180
      %p184 = scmp.eq.s32.totalorder %s25, 0
      %p185 = por %p183, %p184
      %p186 = scmp.ne.s32.totalorder %s178, %s180
      %p187 = scmp.eq.s32.totalorder %s30, 1
      %p188 = por %p186, %p187
      %p189 = scmp.ne.s32.totalorder %s180, %s181
      %p190 = scmp.eq.s32.totalorder %s30, 0
      %p191 = por %p189, %p190
      %p192 = scmp.ne.s32.totalorder %s180, %s181
      %p193 = scmp.eq.s32.totalorder %s31, 1
      %p194 = por %p192, %p193
      %p196 = scmp.ne.s32.totalorder %s181, %s195
      %p197 = scmp.eq.s32.totalorder %s31, 0
      %p198 = por %p196, %p197
      %s200 = sadd.s32 %s199, 1
      %p203 = scmp.eq.s32.totalorder %s25, 1
      %p204 = scmp.ne.s32.totalorder %s199, %s201
      %p205 = scmp.eq.s32.totalorder %s25, 0
      %p206 = por %p204, %p205
      %p207 = scmp.ne.s32.totalorder %s199, %s201
      %p208 = scmp.eq.s32.totalorder %s30, 1
      %p209 = por %p207, %p208
      %p210 = scmp.ne.s32.totalorder %s201, %s202
      %p211 = scmp.eq.s32.totalorder %s30, 0
      %p212 = por %p210, %p211
      %p213 = scmp.ne.s32.totalorder %s201, %s202
      %p214 = scmp.eq.s32.totalorder %s31, 1
      %p215 = por %p213, %p214
      %p217 = scmp.ne.s32.totalorder %s202, %s216
      %p218 = scmp.eq.s32.totalorder %s31, 0
      %p219 = por %p217, %p218
      %s220 = ssub.s32 %s32, %s44
      %s221 = ssub.s32 %s33, %s40
      %s222 = sor.u32 %s220, %s221
      %p223 = scmp.eq.s32.totalorder %s222, 0
      %s225 = sadd.s32 %s224, 1
      %s226 = scalar_select %p223, %s224, %s225
      %p229 = pneg %p223
      %p230 = scmp.eq.s32.totalorder %s25, 1
      %p231 = por %p229, %p230
      %p232 = scmp.ne.s32.totalorder %s224, %s227
      %p233 = scmp.eq.s32.totalorder %s25, 0
      %p234 = por %p232, %p233
      %p235 = scmp.ne.s32.totalorder %s224, %s227
      %p236 = scmp.eq.s32.totalorder %s30, 1
      %p237 = por %p235, %p236
      %p238 = scmp.ne.s32.totalorder %s227, %s228
      %p239 = scmp.eq.s32.totalorder %s30, 0
      %p240 = por %p238, %p239
      %p241 = scmp.ne.s32.totalorder %s227, %s228
      %p242 = scmp.eq.s32.totalorder %s31, 1
      %p243 = por %p241, %p242
      %p245 = scmp.ne.s32.totalorder %s228, %s244
      %p246 = scmp.eq.s32.totalorder %s31, 0
      %p247 = por %p245, %p246
      %s248 = ssub.s32 %s32, %s44
      %s249 = ssub.s32 %s33, %s40
      %s250 = sor.u32 %s248, %s249
      %p251 = scmp.eq.s32.totalorder %s250, 0
      %s253 = sadd.s32 %s252, 1
      %s254 = scalar_select %p251, %s252, %s253
      %p257 = pneg %p251
      %p258 = scmp.eq.s32.totalorder %s25, 1
      %p259 = por %p257, %p258
      %p260 = scmp.ne.s32.totalorder %s252, %s255
      %p261 = scmp.eq.s32.totalorder %s25, 0
      %p262 = por %p260, %p261
      %p263 = scmp.ne.s32.totalorder %s252, %s255
      %p264 = scmp.eq.s32.totalorder %s30, 1
      %p265 = por %p263, %p264
      %p266 = scmp.ne.s32.totalorder %s255, %s256
      %p267 = scmp.eq.s32.totalorder %s30, 0
      %p268 = por %p266, %p267
      %p269 = scmp.ne.s32.totalorder %s255, %s256
      %p270 = scmp.eq.s32.totalorder %s31, 1
      %p271 = por %p269, %p270
      %p273 = scmp.ne.s32.totalorder %s256, %s272
      %p274 = scmp.eq.s32.totalorder %s31, 0
      %p275 = por %p273, %p274
      %s276 = ssub.s32 %s32, %s44
      %s277 = ssub.s32 %s33, %s40
      %s278 = sor.u32 %s276, %s277
      %p279 = scmp.eq.s32.totalorder %s278, 0
      %s281 = sadd.s32 %s280, 1
      %s282 = scalar_select %p279, %s280, %s281
      %p285 = pneg %p279
      %p286 = scmp.eq.s32.totalorder %s25, 1
      %p287 = por %p285, %p286
      %p288 = scmp.ne.s32.totalorder %s280, %s283
      %p289 = scmp.eq.s32.totalorder %s25, 0
      %p290 = por %p288, %p289
      %p291 = scmp.ne.s32.totalorder %s280, %s283
      %p292 = scmp.eq.s32.totalorder %s30, 1
      %p293 = por %p291, %p292
      %p294 = scmp.ne.s32.totalorder %s283, %s284
      %p295 = scmp.eq.s32.totalorder %s30, 0
      %p296 = por %p294, %p295
      %p297 = scmp.ne.s32.totalorder %s283, %s284
      %p298 = scmp.eq.s32.totalorder %s31, 1
      %p299 = por %p297, %p298
      %p301 = scmp.ne.s32.totalorder %s284, %s300
      %p302 = scmp.eq.s32.totalorder %s31, 0
      %p303 = por %p301, %p302
      %p304 = scmp.le.s32.totalorder 1, %s25
      %p305 = scmp.lt.s32.totalorder %s25, 3
      %p306 = pnand %p304, %p305
      %p307 = pneg %p306
      // Predicated region
      $region9: #{tpu_custom_call.1} parent=5 // pred_check
        _
      $region10: #{tpu_custom_call.1} parent=5 // pred_check_branch
        %309 = sbr.rel (%p306) target = $region12
      $region11: #{tpu_custom_call.1} parent=5 // pred_region
        %s310 = ssub.s32 %s25, 1
        // Predicated region
        $region13: #{tpu_custom_call.1} parent=11 // pred_check
          %p311 = pneg %p86
        $region14: #{tpu_custom_call.1} parent=11 // pred_check_branch
          %313 = sbr.rel (%p311) target = $region16
        $region15: #{tpu_custom_call.1} parent=11 // pred_region
          _
        $region16: #{tpu_custom_call.1} parent=11 // pred_fallthru
          _
        // Predicated region
        $region17: #{tpu_custom_call.1} parent=11 // pred_check
          %p314 = pneg %p107
        $region18: #{tpu_custom_call.1} parent=11 // pred_check_branch
          %316 = sbr.rel (%p314) target = $region20
        $region19: #{tpu_custom_call.1} parent=11 // pred_region
          _
        $region20: #{tpu_custom_call.1} parent=11 // pred_fallthru
          _
        // Predicated region
        $region21: #{tpu_custom_call.1} parent=11 // pred_check
          %p317 = pneg %p128
        $region22: #{tpu_custom_call.1} parent=11 // pred_check_branch
          %319 = sbr.rel (%p317) target = $region24
        $region23: #{tpu_custom_call.1} parent=11 // pred_region
          %s321 = ssub.s32 128, 128
          %322 = vsyncadd [#allocation8], %s321
          %s324 = sshll.u32 [#allocation7], 4
          %s325 = int_to_ptr.vmem [resolvable:$true] %s324
          %327 = dma.hbm_to_vmem [thread:$0]  %s3, 128, %s325, [#allocation8]
        $region24: #{tpu_custom_call.1} parent=11 // pred_fallthru
          _
        // Predicated region
        $region25: #{tpu_custom_call.1} parent=11 // pred_check
          %p328 = pneg %p149
        $region26: #{tpu_custom_call.1} parent=11 // pred_check_branch
          %330 = sbr.rel (%p328) target = $region28
        $region27: #{tpu_custom_call.1} parent=11 // pred_region
          %s332 = ssub.s32 128, 128
          %333 = vsyncadd [#allocation11], %s332
          %s335 = sshll.u32 [#allocation10], 4
          %s336 = int_to_ptr.vmem [resolvable:$true] %s335
          %338 = dma.hbm_to_vmem [thread:$0]  %s4, 128, %s336, [#allocation11]
        $region28: #{tpu_custom_call.1} parent=11 // pred_fallthru
          _
        // Predicated region
        $region29: #{tpu_custom_call.1} parent=11 // pred_check
          %p339 = pneg %p170
        $region30: #{tpu_custom_call.1} parent=11 // pred_check_branch
          %341 = sbr.rel (%p339) target = $region32
        $region31: #{tpu_custom_call.1} parent=11 // pred_region
          _
        $region32: #{tpu_custom_call.1} parent=11 // pred_fallthru
          _
        // Predicated region
        $region33: #{tpu_custom_call.1} parent=11 // pred_check
          %p342 = pneg %p191
        $region34: #{tpu_custom_call.1} parent=11 // pred_check_branch
          %344 = sbr.rel (%p342) target = $region36
        $region35: #{tpu_custom_call.1} parent=11 // pred_region
          _
        $region36: #{tpu_custom_call.1} parent=11 // pred_fallthru
          _
        // Predicated region
        $region37: #{tpu_custom_call.1} parent=11 // pred_check
          %p345 = pneg %p212
        $region38: #{tpu_custom_call.1} parent=11 // pred_check_branch
          %347 = sbr.rel (%p345) target = $region40
        $region39: #{tpu_custom_call.1} parent=11 // pred_region
          _
        $region40: #{tpu_custom_call.1} parent=11 // pred_fallthru
          _
      $region12: #{tpu_custom_call.1} parent=5 // pred_fallthru
        _
      %p348 = scmp.lt.s32.totalorder %s25, 2
      // Predicated region
      $region41: #{tpu_custom_call.1} parent=5 // pred_check
        %p349 = pneg %p348
      $region42: #{tpu_custom_call.1} parent=5 // pred_check_branch
        %351 = sbr.rel (%p349) target = $region44
      $region43: #{tpu_custom_call.1} parent=5 // pred_region
        // Predicated region
        $region45: #{tpu_custom_call.1} parent=43 // pred_check
          %p352 = pneg %p59
        $region46: #{tpu_custom_call.1} parent=43 // pred_check_branch
          %354 = sbr.rel (%p352) target = $region48
        $region47: #{tpu_custom_call.1} parent=43 // pred_region
          %s355 = smul.u32 2, %s32
          %p356 = scmp.lt.s32.totalorder %s355, 3
          %s357 = scalar_select %p356, %s355, 3
          %p358 = scmp.lt.s32.totalorder %s33, 0
          %s359 = scalar_select %p358, %s33, 0
          %s360 = sadd.s32 %s359, %s357
          %s361 = smul.addr %s360, 8
          %s362 = scalar_lea.vmem %s0, %s361
          %s363 = smul.u32 2, %s32
        $region48: #{tpu_custom_call.1} parent=43 // pred_fallthru
          _
      $region44: #{tpu_custom_call.1} parent=5 // pred_fallthru
        _
      %p364 = scmp.le.s32.totalorder 1, %s25
      %p365 = scmp.lt.s32.totalorder %s25, 3
      %p366 = pnand %p364, %p365
      %p367 = pneg %p366
      // Predicated region
      $region49: #{tpu_custom_call.1} parent=5 // pred_check
        _
      $region50: #{tpu_custom_call.1} parent=5 // pred_check_branch
        %369 = sbr.rel (%p366) target = $region52
      $region51: #{tpu_custom_call.1} parent=5 // pred_region
        %s370 = ssub.s32 %s25, 1
        // Predicated region
        $region53: #{tpu_custom_call.1} parent=51 // pred_check
          %p371 = pneg %p128
        $region54: #{tpu_custom_call.1} parent=51 // pred_check_branch
          %373 = sbr.rel (%p371) target = $region56
        $region55: #{tpu_custom_call.1} parent=51 // pred_region
          %374 = dma.done [#allocation8], 128
        $region56: #{tpu_custom_call.1} parent=51 // pred_fallthru
          _
        // Predicated region
        $region57: #{tpu_custom_call.1} parent=51 // pred_check
          %p375 = pneg %p149
        $region58: #{tpu_custom_call.1} parent=51 // pred_check_branch
          %377 = sbr.rel (%p375) target = $region60
        $region59: #{tpu_custom_call.1} parent=51 // pred_region
          %378 = dma.done [#allocation11], 128
        $region60: #{tpu_custom_call.1} parent=51 // pred_fallthru
          _
        %s379 = smul.u32 2, %s34
        %p380 = scmp.lt.s32.totalorder %s379, 3
        %s381 = scalar_select %p380, %s379, 3
        %p382 = scmp.lt.s32.totalorder %s35, 0
        %s383 = scalar_select %p382, %s35, 0
        %s384 = sadd.s32 %s383, %s381
        %s385 = smul.addr %s384, 8
        %s386 = scalar_lea.vmem %s0, %s385
        %p387 = pneg %p65
        %p388 = pneg %p62
        %p389 = pneg %p86
        %p390 = pneg %p83
        %p391 = pneg %p107
        %p392 = pneg %p104
        %p393 = pneg %p128
        %p394 = pneg %p125
        %p395 = pneg %p149
        %p396 = pneg %p146
        %p397 = pneg %p170
        %p398 = pneg %p167
        %p399 = pneg %p191
        %p400 = pneg %p188
        %p401 = pneg %p212
        %p402 = pneg %p209
        %p403 = pneg %p240
        %p404 = pneg %p237
        %s405 = sand.u32 %s227, 1
        %s406 = scalar_lea.sflag [#allocation9], %s405
        %s407 = sand.u32 %s227, 1
        %s408 = smul.addr %s407, 16
        %s409 = scalar_lea.vmem [#allocation12], %s408
        %p410 = pneg %p268
        %p411 = pneg %p265
        %s412 = sand.u32 %s30, 1
        %s413 = scalar_lea.sflag [#allocation14], %s412
        %s414 = sand.u32 %s255, 1
        %s415 = smul.addr %s414, 16
        %s416 = scalar_lea.vmem [#allocation13], %s415
        %p417 = pneg %p296
        %p418 = pneg %p293
        %s419 = sand.u32 %s30, 1
        %s420 = scalar_lea.sflag [#allocation14], %s419
        %s421 = sand.u32 %s283, 1
        %s422 = smul.addr %s421, 16
        %s423 = scalar_lea.vmem [#allocation15], %s422
        %s424 = smul.u32 2, %s34
        %p425 = scmp.lt.s32.totalorder %s424, 3
        %s426 = scalar_select %p425, %s424, 3
        %p427 = scmp.lt.s32.totalorder %s35, 0
        %s428 = scalar_select %p427, %s35, 0
        %s429 = sadd.s32 %s428, %s426
        %s430 = smul.addr %s429, 8
        %s431 = scalar_lea.vmem %s0, %s430
        %s432 = smul.u32 2, %s34
        %s433 = smul.u32 2, %s34
        %s434 = smul.u32 2, %s34
        %s435 = smul.u32 2, %s34
        %p437 = scmp.eq.s32.totalorder %s35, 0
        // Predicated region
        $region61: #{tpu_custom_call.1} parent=51 // pred_check
          %p438 = pneg %p437
        $region62: #{tpu_custom_call.1} parent=51 // pred_check_branch
          %440 = sbr.rel (%p438) target = $region64
        $region63: #{tpu_custom_call.1} parent=51 // pred_region
          %vm441 = vcmask 254976
          %442 = vst.msk [vmem:[#allocation5] sm:$0x3] %vm441, 0.0
          %443 = vst.msk [vmem:[#allocation6] sm:$0x3] %vm441, 0.0
        $region64: #{tpu_custom_call.1} parent=51 // pred_fallthru
          _
        %v444 = vld [vmem:[%s431] sm:$0xff]
        %v445 = vld [vmem:[%s431 + $0x8] sm:$0xff]
        %v446 = vpack.c.bf16 %v445, %v444
        %v447 = vld [vmem:[%s1] sm:$0xf]
        %v448 = vld [vmem:[%s1 + $0x4] sm:$0xf]
        %v449 = vld [vmem:[%s2] sm:$0x1]
        %v451 = vlaneseq
        %v452 = vshrl.u32 %v451, 7
        %v453 = vsub.s32 0, %v452
        %v454 = vrot.slane %v449, %v453
        %v458 = vunpack.c.l.b16 %v447
        %v459 = vunpack.c.l.b16 %v448
        %v460 = vpack.c.b16 %v459, %v458
        %vm462 = vcmask 130048
        %v464 = vsel %vm462, %v446, 0
        %466 = vmatprep.subr.bf16.mxu0 0
        %467 = vmatpush1.bf16.msra.mxu0 %v460
        %468 = vmatprep.subr.bf16.mxu0 0
        %469 = vmatpush1.bf16.msra.mxu0 0
        %470 = vmatprep.subr.bf16.mxu0 0
        %471 = vmatpush1.bf16.msra.mxu0 0
        %472 = vmatprep.subr.bf16.mxu0 0
        %473 = vmatpush1.bf16.msra.mxu0 0
        %474 = vmatprep.subr.bf16.mxu0 0
        %475 = vmatpush1.bf16.msra.mxu0 0
        %476 = vmatprep.subr.bf16.mxu0 0
        %477 = vmatpush1.bf16.msra.mxu0 0
        %478 = vmatprep.subr.bf16.mxu0 0
        %479 = vmatpush1.bf16.msra.mxu0 0
        %480 = vmatprep.subr.bf16.mxu0 0
        %481 = vmatpush1.bf16.msra.mxu0 0
        %482 = vmatprep.subr.bf16.mxu0 0
        %483 = vmatpush1.bf16.msra.mxu0 0
        %484 = vmatprep.subr.bf16.mxu0 0
        %485 = vmatpush1.bf16.msra.mxu0 0
        %486 = vmatprep.subr.bf16.mxu0 0
        %487 = vmatpush1.bf16.msra.mxu0 0
        %488 = vmatprep.subr.bf16.mxu0 0
        %489 = vmatpush1.bf16.msra.mxu0 0
        %490 = vmatprep.subr.bf16.mxu0 0
        %491 = vmatpush1.bf16.msra.mxu0 0
        %492 = vmatprep.subr.bf16.mxu0 0
        %493 = vmatpush1.bf16.msra.mxu0 0
        %494 = vmatprep.subr.bf16.mxu0 0
        %495 = vmatpush1.bf16.msra.mxu0 0
        %496 = vmatprep.subr.bf16.mxu0 0
        %497 = vmatpush1.bf16.msra.mxu0 0
        %498 = vmatprep.mubr.bf16.mxu0 0
        %499 = vmatmul.mubr.bf16.gmra.mrb[0].mxu0 %v464
        %v500 = vpop.f32.mrb[0].mxu0
        %v501 = vadd.f32 %v454, %v500
        %v502 = vpop.f32.mrb[0].mxu0
        %v503 = vpop.f32.mrb[0].mxu0
        %v504 = vadd.f32 %v454, %v503
        %v505 = vpop.f32.mrb[0].mxu0
        %506 = vdwg.mxu0
        %v507 = vxor.u32 %v501, 2147483648
        %v508 = vxor.u32 %v504, 2147483648
        %v509 = vmul.f32 %v507, 1.442695
        %v510 = vpow.pop %v509
        %v511 = vmul.f32 %v508, 1.442695
        %v512 = vpow.pop %v511
        %v513 = vadd.f32 %v510, 1.0
        %v514 = vadd.f32 %v512, 1.0
        %v515 = vrcp.pop %v513
        %v516 = vmul.f32 1.0, %v515
        %v517 = vrcp.pop %v514
        %v518 = vmul.f32 1.0, %v517
        %521 = vrot.lane.b32.xlu0 %v516, 104
        %v522 = vpop.permute.xlu0 %521
        %523 = vrot.lane.b32.xlu0 %v518, 104
        %v524 = vpop.permute.xlu0 %523
        %v527 = vmul.f32 %v501, %v522
        %v528 = vmul.f32 %v504, %v524
        %vm529 = vcmask 64512
        %530 = vst.msk [vmem:[#allocation2] sm:$0xff] %vm529, %v527
        %531 = vst.msk [vmem:[#allocation2 + $0x8] sm:$0xff] %vm529, %v528
        %534 = vrot.lane.b32.xlu0 %v501, 120
        %v535 = vpop.permute.xlu0 %534
        %536 = vrot.lane.b32.xlu0 %v504, 120
        %v537 = vpop.permute.xlu0 %536
        %540 = vst.msk [vmem:[#allocation3] sm:$0xff] %vm462, %v535
        %541 = vst.msk [vmem:[#allocation3 + $0x8] sm:$0xff] %vm462, %v537
        %542 = vrot.lane.b32.xlu0 %v516, 96
        %v543 = vpop.permute.xlu0 %542
        %544 = vrot.lane.b32.xlu0 %v518, 96
        %v545 = vpop.permute.xlu0 %544
        %548 = vst.msk [vmem:[#allocation4] sm:$0xff] %vm462, %v543
        %549 = vst.msk [vmem:[#allocation4 + $0x8] sm:$0xff] %vm462, %v545
        %v550 = vld [vmem:[#allocation7] sm:$0xff]
        %v551 = vld [vmem:[#allocation10] sm:$0xff]
        %v552 = vld [vmem:[#allocation5] sm:$0x3]
        %v553 = vld [vmem:[#allocation6] sm:$0x3]
        %v554 = vld [vmem:[#allocation2] sm:$0xff]
        %v555 = vld [vmem:[#allocation2 + $0x8] sm:$0xff]
        %558 = vrot.lane.b32.xlu0 %v554, 8
        %v559 = vpop.permute.xlu0 %558
        %560 = vrot.lane.b32.xlu0 %v555, 8
        %v561 = vpop.permute.xlu0 %560
        %564 = vrot.lane.b32.xlu0 %v554, 16
        %v565 = vpop.permute.xlu0 %564
        %566 = vrot.lane.b32.xlu0 %v555, 16
        %v567 = vpop.permute.xlu0 %566
        %570 = vrot.lane.b32.xlu0 %v554, 24
        %v571 = vpop.permute.xlu0 %570
        %572 = vrot.lane.b32.xlu0 %v555, 24
        %v573 = vpop.permute.xlu0 %572
        %v576 = vsel %vm529, %v554, %v559
        %v577 = vsel %vm529, %v555, %v561
        %v578 = vsel %vm462, %v576, %v565
        %v579 = vsel %vm462, %v577, %v567
        %vm580 = vcmask 195584
        %v581 = vsel %vm580, %v578, %v571
        %v582 = vsel %vm580, %v579, %v573
        %v585 = vrot.slane %v581, 7
        %v586 = vrot.slane %v582, 7
        %vm589 = vcmask 1040384
        %v590 = vsel %vm589, 0.0, %v585
        %v591 = vsel %vm589, 0.0, %v586
        %v592 = vlaneseq
        %v593 = vshrl.u32 %v592, 7
        %v594 = vsub.s32 0, %v593
        %v595 = vrot.slane %v551, %v594
        %v596 = vmul.f32 %v595, %v590
        %v597 = vmul.f32 %v595, %v591
        %v598 = vlaneseq
        %v599 = vshrl.u32 %v598, 7
        %v600 = vsub.s32 0, %v599
        %v601 = vrot.slane %v550, %v600
        %v602 = vmul.f32 %v601, %v590
        %v603 = vmul.f32 %v601, %v591
        %v604 = vadd.f32 %v581, %v602
        %v605 = vadd.f32 %v582, %v603
        %v608 = vrot.slane %v604, 6
        %v609 = vrot.slane %v605, 6
        %vm612 = vcmask 1041408
        %v613 = vsel %vm612, 0.0, %v608
        %v614 = vsel %vm612, 0.0, %v609
        %v617 = vrot.slane %v596, 6
        %v618 = vrot.slane %v597, 6
        %v621 = vsel %vm612, 0.0, %v617
        %v622 = vsel %vm612, 0.0, %v618
        %v623 = vlaneseq
        %v624 = vshrl.u32 %v623, 7
        %v625 = vsub.s32 1, %v624
        %v626 = vrot.slane %v550, %v625
        %v627 = vmul.f32 %v626, %v613
        %v628 = vmul.f32 %v626, %v614
        %v629 = vadd.f32 %v604, %v627
        %v630 = vadd.f32 %v605, %v628
        %v631 = vlaneseq
        %v632 = vshrl.u32 %v631, 7
        %v633 = vsub.s32 1, %v632
        %v634 = vrot.slane %v551, %v633
        %v635 = vmul.f32 %v634, %v621
        %v636 = vmul.f32 %v634, %v622
        %v637 = vsub.f32 %v629, %v635
        %v638 = vsub.f32 %v630, %v636
        %v639 = vmul.f32 %v626, %v621
        %v640 = vmul.f32 %v626, %v622
        %v641 = vadd.f32 %v596, %v639
        %v642 = vadd.f32 %v597, %v640
        %v643 = vmul.f32 %v634, %v613
        %v644 = vmul.f32 %v634, %v614
        %v645 = vadd.f32 %v641, %v643
        %v646 = vadd.f32 %v642, %v644
        %v649 = vrot.slane %v637, 4
        %v650 = vrot.slane %v638, 4
        %vm653 = vcmask 1043456
        %v654 = vsel %vm653, 0.0, %v649
        %v655 = vsel %vm653, 0.0, %v650
        %v658 = vrot.slane %v645, 4
        %v659 = vrot.slane %v646, 4
        %v662 = vsel %vm653, 0.0, %v658
        %v663 = vsel %vm653, 0.0, %v659
        %v664 = vlaneseq
        %v665 = vshrl.u32 %v664, 7
        %v666 = vsub.s32 3, %v665
        %v667 = vrot.slane %v550, %v666
        %v668 = vmul.f32 %v667, %v654
        %v669 = vmul.f32 %v667, %v655
        %v670 = vadd.f32 %v637, %v668
        %v671 = vadd.f32 %v638, %v669
        %v672 = vlaneseq
        %v673 = vshrl.u32 %v672, 7
        %v674 = vsub.s32 3, %v673
        %v675 = vrot.slane %v551, %v674
        %v676 = vmul.f32 %v675, %v662
        %v677 = vmul.f32 %v675, %v663
        %v678 = vsub.f32 %v670, %v676
        %v679 = vsub.f32 %v671, %v677
        %v680 = vmul.f32 %v667, %v662
        %v681 = vmul.f32 %v667, %v663
        %v682 = vadd.f32 %v645, %v680
        %v683 = vadd.f32 %v646, %v681
        %v684 = vmul.f32 %v675, %v654
        %v685 = vmul.f32 %v675, %v655
        %v686 = vadd.f32 %v682, %v684
        %v687 = vadd.f32 %v683, %v685
        %v690 = vunpack.c.l.s4 1966171168
        %v691 = vunpack.c.0.s8 %v690
        %v692 = vlaneseq
        %v693 = vshrl.u32 %v692, 7
        %v694 = vsub.s32 %v691, %v693
        %v695 = vrot.slane %v552, %v694
        %v696 = vcombine.high %v695, %v695
        %v698 = vunpack.c.l.s4 1966171168
        %v699 = vunpack.c.0.s8 %v698
        %v700 = vlaneseq
        %v701 = vshrl.u32 %v700, 7
        %v702 = vsub.s32 %v699, %v701
        %v703 = vrot.slane %v695, %v702
        %v705 = vunpack.c.l.s4 1966171168
        %v706 = vunpack.c.0.s8 %v705
        %v707 = vlaneseq
        %v708 = vshrl.u32 %v707, 7
        %v709 = vsub.s32 %v706, %v708
        %v710 = vrot.slane %v696, %v709
        %v713 = vunpack.c.l.s4 1966171168
        %v714 = vunpack.c.0.s8 %v713
        %v715 = vlaneseq
        %v716 = vshrl.u32 %v715, 7
        %v717 = vsub.s32 %v714, %v716
        %v718 = vrot.slane %v553, %v717
        %v719 = vcombine.high %v718, %v718
        %v721 = vunpack.c.l.s4 1966171168
        %v722 = vunpack.c.0.s8 %v721
        %v723 = vlaneseq
        %v724 = vshrl.u32 %v723, 7
        %v725 = vsub.s32 %v722, %v724
        %v726 = vrot.slane %v718, %v725
        %v728 = vunpack.c.l.s4 1966171168
        %v729 = vunpack.c.0.s8 %v728
        %v730 = vlaneseq
        %v731 = vshrl.u32 %v730, 7
        %v732 = vsub.s32 %v729, %v731
        %v733 = vrot.slane %v719, %v732
        %v734 = vlaneseq
        %v735 = vshrl.u32 %v734, 7
        %v736 = vsub.s32 0, %v735
        %v737 = vrot.slane %v703, %v736
        %v738 = vlaneseq
        %v739 = vshrl.u32 %v738, 7
        %v740 = vsub.s32 0, %v739
        %v741 = vrot.slane %v710, %v740
        %v744 = vmul.f32 %v550, %v737
        %v745 = vmul.f32 %v550, %v741
        %v746 = vlaneseq
        %v747 = vshrl.u32 %v746, 7
        %v748 = vsub.s32 0, %v747
        %v749 = vrot.slane %v726, %v748
        %v750 = vlaneseq
        %v751 = vshrl.u32 %v750, 7
        %v752 = vsub.s32 0, %v751
        %v753 = vrot.slane %v733, %v752
        %v756 = vmul.f32 %v551, %v749
        %v757 = vmul.f32 %v551, %v753
        %v758 = vsub.f32 %v744, %v756
        %v759 = vsub.f32 %v745, %v757
        %v760 = vadd.f32 %v758, %v678
        %v761 = vadd.f32 %v759, %v679
        %v762 = vmul.f32 %v550, %v749
        %v763 = vmul.f32 %v550, %v753
        %v764 = vmul.f32 %v551, %v737
        %v765 = vmul.f32 %v551, %v741
        %v766 = vadd.f32 %v762, %v764
        %v767 = vadd.f32 %v763, %v765
        %v768 = vadd.f32 %v766, %v686
        %v769 = vadd.f32 %v767, %v687
        %vm770 = vcmask 261120
        %771 = vst.msk [vmem:[%s416] sm:$0xff] %vm770, %v760
        %772 = vst.msk [vmem:[%s416 + $0x8] sm:$0xff] %vm770, %v761
        %773 = vst.msk [vmem:[%s423] sm:$0xff] %vm770, %v768
        %774 = vst.msk [vmem:[%s423 + $0x8] sm:$0xff] %vm770, %v769
        %v777 = vrot.slane %v761, 7
        %vm780 = vcmask 261127
        %781 = vst.msk [vmem:[#allocation5 - $0x7] sm:$0x80] %vm780, %v760
        %vm782 = vcmask 253952
        %783 = vst.msk [vmem:[#allocation5 + $0x1] sm:$0x1] %vm782, %v777
        %v786 = vrot.slane %v769, 7
        %789 = vst.msk [vmem:[#allocation6 - $0x7] sm:$0x80] %vm780, %v768
        %790 = vst.msk [vmem:[#allocation6 + $0x1] sm:$0x1] %vm782, %v786
        %v791 = vld [vmem:[%s416] sm:$0xff]
        %v792 = vld [vmem:[%s416 + $0x8] sm:$0xff]
        %v793 = vpack.c.bf16 %v792, %v791
        %v794 = vld [vmem:[%s5] sm:$0xf]
        %v795 = vld [vmem:[%s5 + $0x4] sm:$0xf]
        %v796 = vld [vmem:[%s5 + $0x8] sm:$0xf]
        %v797 = vld [vmem:[%s5 + $0xc] sm:$0xf]
        %v798 = vld [vmem:[%s423] sm:$0xff]
        %v799 = vld [vmem:[%s423 + $0x8] sm:$0xff]
        %v800 = vpack.c.bf16 %v799, %v798
        %v801 = vld [vmem:[%s6] sm:$0xf]
        %v802 = vld [vmem:[%s6 + $0x4] sm:$0xf]
        %v803 = vld [vmem:[%s6 + $0x8] sm:$0xf]
        %v804 = vld [vmem:[%s6 + $0xc] sm:$0xf]
        %v809 = vunpack.c.l.b16 %v801
        %v810 = vunpack.c.l.b16 %v802
        %v811 = vunpack.c.l.b16 %v803
        %v812 = vunpack.c.l.b16 %v804
        %v813 = vpack.c.b16 %v810, %v809
        %v814 = vpack.c.b16 %v812, %v811
        %v818 = vsel %vm770, %v800, 0
        %820 = vmatprep.subr.bf16.mxu0 0
        %821 = vmatpush1.bf16.msra.mxu0 %v813
        %822 = vmatprep.subr.bf16.mxu0 0
        %823 = vmatpush1.bf16.msra.mxu0 %v814
        %824 = vmatprep.subr.bf16.mxu0 0
        %825 = vmatpush1.bf16.msra.mxu0 0
        %826 = vmatprep.subr.bf16.mxu0 0
        %827 = vmatpush1.bf16.msra.mxu0 0
        %828 = vmatprep.subr.bf16.mxu0 0
        %829 = vmatpush1.bf16.msra.mxu0 0
        %830 = vmatprep.subr.bf16.mxu0 0
        %831 = vmatpush1.bf16.msra.mxu0 0
        %832 = vmatprep.subr.bf16.mxu0 0
        %833 = vmatpush1.bf16.msra.mxu0 0
        %834 = vmatprep.subr.bf16.mxu0 0
        %835 = vmatpush1.bf16.msra.mxu0 0
        %836 = vmatprep.subr.bf16.mxu0 0
        %837 = vmatpush1.bf16.msra.mxu0 0
        %838 = vmatprep.subr.bf16.mxu0 0
        %839 = vmatpush1.bf16.msra.mxu0 0
        %840 = vmatprep.subr.bf16.mxu0 0
        %841 = vmatpush1.bf16.msra.mxu0 0
        %842 = vmatprep.subr.bf16.mxu0 0
        %843 = vmatpush1.bf16.msra.mxu0 0
        %844 = vmatprep.subr.bf16.mxu0 0
        %845 = vmatpush1.bf16.msra.mxu0 0
        %846 = vmatprep.subr.bf16.mxu0 0
        %847 = vmatpush1.bf16.msra.mxu0 0
        %848 = vmatprep.subr.bf16.mxu0 0
        %849 = vmatpush1.bf16.msra.mxu0 0
        %850 = vmatprep.subr.bf16.mxu0 0
        %851 = vmatpush1.bf16.msra.mxu0 0
        %852 = vmatprep.mubr.bf16.mxu0 0
        %853 = vmatmul.mubr.bf16.gmra.mrb[0].mxu0 %v818
        %v854 = vpop.f32.mrb[0].mxu0
        %v855 = vadd.f32 0.0, %v854
        %v856 = vpop.f32.mrb[0].mxu0
        %v857 = vpop.f32.mrb[0].mxu0
        %v858 = vadd.f32 0.0, %v857
        %v859 = vpop.f32.mrb[0].mxu0
        %860 = vdwg.mxu0
        %v865 = vunpack.c.l.b16 %v794
        %v866 = vunpack.c.l.b16 %v795
        %v867 = vunpack.c.l.b16 %v796
        %v868 = vunpack.c.l.b16 %v797
        %v869 = vpack.c.b16 %v866, %v865
        %v870 = vpack.c.b16 %v868, %v867
        %v874 = vsel %vm770, %v793, 0
        %876 = vmatprep.subr.bf16.mxu0 0
        %877 = vmatpush1.bf16.msra.mxu0 %v869
        %878 = vmatprep.subr.bf16.mxu0 0
        %879 = vmatpush1.bf16.msra.mxu0 %v870
        %880 = vmatprep.subr.bf16.mxu0 0
        %881 = vmatpush1.bf16.msra.mxu0 0
        %882 = vmatprep.subr.bf16.mxu0 0
        %883 = vmatpush1.bf16.msra.mxu0 0
        %884 = vmatprep.subr.bf16.mxu0 0
        %885 = vmatpush1.bf16.msra.mxu0 0
        %886 = vmatprep.subr.bf16.mxu0 0
        %887 = vmatpush1.bf16.msra.mxu0 0
        %888 = vmatprep.subr.bf16.mxu0 0
        %889 = vmatpush1.bf16.msra.mxu0 0
        %890 = vmatprep.subr.bf16.mxu0 0
        %891 = vmatpush1.bf16.msra.mxu0 0
        %892 = vmatprep.subr.bf16.mxu0 0
        %893 = vmatpush1.bf16.msra.mxu0 0
        %894 = vmatprep.subr.bf16.mxu0 0
        %895 = vmatpush1.bf16.msra.mxu0 0
        %896 = vmatprep.subr.bf16.mxu0 0
        %897 = vmatpush1.bf16.msra.mxu0 0
        %898 = vmatprep.subr.bf16.mxu0 0
        %899 = vmatpush1.bf16.msra.mxu0 0
        %900 = vmatprep.subr.bf16.mxu0 0
        %901 = vmatpush1.bf16.msra.mxu0 0
        %902 = vmatprep.subr.bf16.mxu0 0
        %903 = vmatpush1.bf16.msra.mxu0 0
        %904 = vmatprep.subr.bf16.mxu0 0
        %905 = vmatpush1.bf16.msra.mxu0 0
        %906 = vmatprep.subr.bf16.mxu0 0
        %907 = vmatpush1.bf16.msra.mxu0 0
        %908 = vmatprep.mubr.bf16.mxu0 0
        %909 = vmatmul.mubr.bf16.gmra.mrb[0].mxu0 %v874
        %v910 = vpop.f32.mrb[0].mxu0
        %v911 = vadd.f32 %v855, %v910
        %v912 = vpop.f32.mrb[0].mxu0
        %v913 = vpop.f32.mrb[0].mxu0
        %v914 = vadd.f32 %v858, %v913
        %v915 = vpop.f32.mrb[0].mxu0
        %916 = vdwg.mxu0
        %v917 = vld [vmem:[%s7] sm:$0x1]
        %v919 = vlaneseq
        %v920 = vshrl.u32 %v919, 7
        %v921 = vsub.s32 0, %v920
        %v922 = vrot.slane %v917, %v921
        %v924 = vadd.f32 %v911, %v922
        %v925 = vadd.f32 %v914, %v922
        %v926 = vsel %vm462, %v924, 0.0
        %927 = vadd.xlane.f32.xlu0 %v926
        %v928 = vpop.xlane.xlu0 %927
        %v929 = vsel %vm462, %v925, 0.0
        %930 = vadd.xlane.f32.xlu0 %v929
        %v931 = vpop.xlane.xlu0 %930
        %v932 = vrcp.pop 16.0
        %v933 = vmul.f32 %v928, %v932
        %v934 = vmul.f32 %v931, %v932
        %v935 = vsub.f32 %v924, %v933
        %v936 = vsub.f32 %v925, %v934
        %v937 = vmul.f32 %v935, %v935
        %v938 = vmul.f32 %v936, %v936
        %v939 = vsel %vm462, %v937, 0.0
        %940 = vadd.xlane.f32.xlu0 %v939
        %v941 = vpop.xlane.xlu0 %940
        %v942 = vsel %vm462, %v938, 0.0
        %943 = vadd.xlane.f32.xlu0 %v942
        %v944 = vpop.xlane.xlu0 %943
        %v945 = vmul.f32 %v941, %v932
        %v946 = vmul.f32 %v944, %v932
        %v947 = vadd.f32 %v945, 1e-05
        %v948 = vadd.f32 %v946, 1e-05
        %v949 = vrsqrt.pop %v947
        %v950 = vrsqrt.pop %v948
        %v951 = vmul.f32 %v935, %v949
        %v952 = vmul.f32 %v936, %v950
        %v953 = vld [vmem:[#allocation4] sm:$0xff]
        %v954 = vld [vmem:[#allocation4 + $0x8] sm:$0xff]
        %v955 = vld [vmem:[#allocation3] sm:$0xff]
        %v956 = vld [vmem:[#allocation3 + $0x8] sm:$0xff]
        %v957 = vmul.f32 %v951, %v953
        %v958 = vmul.f32 %v952, %v954
        %v959 = vsub.f32 1.0, %v953
        %v960 = vsub.f32 1.0, %v954
        %v961 = vmul.f32 %v955, %v959
        %v962 = vmul.f32 %v956, %v960
        %v963 = vadd.f32 %v957, %v961
        %v964 = vadd.f32 %v958, %v962
        %965 = vst.msk [vmem:[%s409] sm:$0xff] %vm462, %v963
        %966 = vst.msk [vmem:[%s409 + $0x8] sm:$0xff] %vm462, %v964
        %s967 = sand.u32 %s227, 1
        %s968 = scalar_lea.sflag [#allocation9], %s967
        %s969 = sand.u32 %s227, 1
        %s970 = smul.addr %s969, 16
        %s971 = scalar_lea.vmem [#allocation12], %s970
        %s972 = sand.u32 %s30, 1
        %s973 = scalar_lea.sflag [#allocation14], %s972
        %s974 = sand.u32 %s255, 1
        %s975 = smul.addr %s974, 16
        %s976 = scalar_lea.vmem [#allocation13], %s975
        %s977 = sand.u32 %s30, 1
        %s978 = scalar_lea.sflag [#allocation14], %s977
        %s979 = sand.u32 %s283, 1
        %s980 = smul.addr %s979, 16
        %s981 = scalar_lea.vmem [#allocation15], %s980
        // Predicated region
        $region65: #{tpu_custom_call.1} parent=51 // pred_check
          %p982 = pneg %p237
        $region66: #{tpu_custom_call.1} parent=51 // pred_check_branch
          %984 = sbr.rel (%p982) target = $region68
        $region67: #{tpu_custom_call.1} parent=51 // pred_region
          %s985 = smul.u32 2, %s34
          %s987 = ssub.s32 256, 256
          %988 = vsyncadd %s968, %s987
          %s989 = sadd.s32 %s35, %s985
          %s990 = smul.addr %s989, 128
          %s991 = scalar_lea.hbm %s8, %s990
          %s992 = sshll.u32 %s971, 4
          %s993 = int_to_ptr.vmem [resolvable:$true] %s992
          %998 = dma.vmem_to_hbm [thread:$0]  %s993, 256, %s991, %s968, 128, 128, 8
        $region68: #{tpu_custom_call.1} parent=51 // pred_fallthru
          _
        // Predicated region
        $region69: #{tpu_custom_call.1} parent=51 // pred_check
          %p999 = pneg %p265
        $region70: #{tpu_custom_call.1} parent=51 // pred_check_branch
          %1001 = sbr.rel (%p999) target = $region72
        $region71: #{tpu_custom_call.1} parent=51 // pred_region
          %s1002 = smul.u32 2, %s34
          %s1004 = ssub.s32 256, 256
          %1005 = vsyncadd %s973, %s1004
          %s1006 = sadd.s32 %s35, %s1002
          %s1007 = smul.addr %s1006, 128
          %s1008 = scalar_lea.hbm %s9, %s1007
          %s1009 = sshll.u32 %s976, 4
          %s1010 = int_to_ptr.vmem [resolvable:$true] %s1009
          %1015 = dma.vmem_to_hbm [thread:$0]  %s1010, 256, %s1008, %s973, 128, 128, 8
        $region72: #{tpu_custom_call.1} parent=51 // pred_fallthru
          _
        // Predicated region
        $region73: #{tpu_custom_call.1} parent=51 // pred_check
          %p1016 = pneg %p293
        $region74: #{tpu_custom_call.1} parent=51 // pred_check_branch
          %1018 = sbr.rel (%p1016) target = $region76
        $region75: #{tpu_custom_call.1} parent=51 // pred_region
          %s1019 = smul.u32 2, %s34
          %s1021 = ssub.s32 256, 256
          %1022 = vsyncadd %s978, %s1021
          %s1023 = sadd.s32 %s35, %s1019
          %s1024 = smul.addr %s1023, 128
          %s1025 = scalar_lea.hbm %s10, %s1024
          %s1026 = sshll.u32 %s981, 4
          %s1027 = int_to_ptr.vmem [resolvable:$true] %s1026
          %1032 = dma.vmem_to_hbm [thread:$0]  %s1027, 256, %s1025, %s978, 128, 128, 8
        $region76: #{tpu_custom_call.1} parent=51 // pred_fallthru
          _
      $region52: #{tpu_custom_call.1} parent=5 // pred_fallthru
        _
      %p1033 = scmp.le.s32.totalorder 2, %s25
      // Predicated region
      $region77: #{tpu_custom_call.1} parent=5 // pred_check
        %p1034 = pneg %p1033
      $region78: #{tpu_custom_call.1} parent=5 // pred_check_branch
        %1036 = sbr.rel (%p1034) target = $region80
      $region79: #{tpu_custom_call.1} parent=5 // pred_region
        %s1037 = ssub.s32 %s25, 2
        // Predicated region
        $region81: #{tpu_custom_call.1} parent=79 // pred_check
          %p1038 = pneg %p243
        $region82: #{tpu_custom_call.1} parent=79 // pred_check_branch
          %1040 = sbr.rel (%p1038) target = $region84
        $region83: #{tpu_custom_call.1} parent=79 // pred_region
          %s1041 = sand.u32 %s228, 1
          %s1042 = scalar_lea.sflag [#allocation9], %s1041
          %s1043 = sand.u32 %s228, 1
          %s1044 = smul.addr %s1043, 16
          %s1045 = scalar_lea.vmem [#allocation12], %s1044
          %1046 = dma.done %s1042, 256
        $region84: #{tpu_custom_call.1} parent=79 // pred_fallthru
          _
        // Predicated region
        $region85: #{tpu_custom_call.1} parent=79 // pred_check
          %p1047 = pneg %p271
        $region86: #{tpu_custom_call.1} parent=79 // pred_check_branch
          %1049 = sbr.rel (%p1047) target = $region88
        $region87: #{tpu_custom_call.1} parent=79 // pred_region
          %s1050 = sand.u32 %s31, 1
          %s1051 = scalar_lea.sflag [#allocation14], %s1050
          %s1052 = sand.u32 %s256, 1
          %s1053 = smul.addr %s1052, 16
          %s1054 = scalar_lea.vmem [#allocation13], %s1053
          %1055 = dma.done %s1051, 256
        $region88: #{tpu_custom_call.1} parent=79 // pred_fallthru
          _
        // Predicated region
        $region89: #{tpu_custom_call.1} parent=79 // pred_check
          %p1056 = pneg %p299
        $region90: #{tpu_custom_call.1} parent=79 // pred_check_branch
          %1058 = sbr.rel (%p1056) target = $region92
        $region91: #{tpu_custom_call.1} parent=79 // pred_region
          %s1059 = sand.u32 %s31, 1
          %s1060 = scalar_lea.sflag [#allocation14], %s1059
          %s1061 = sand.u32 %s284, 1
          %s1062 = smul.addr %s1061, 16
          %s1063 = scalar_lea.vmem [#allocation15], %s1062
          %1064 = dma.done %s1060, 256
        $region92: #{tpu_custom_call.1} parent=79 // pred_fallthru
          _
      $region80: #{tpu_custom_call.1} parent=5 // pred_fallthru
        _
    $region6: #{tpu_custom_call.1} parent=1 // loop_footer
      %s29 = sadd.s32 1, %s25
    $region7: #{tpu_custom_call.1} parent=1 // loop_footer_branch
      %24 = sbr.rel target = $region3
    $region8: #{tpu_custom_call.1} parent=1 // loop_exit
      _
    %1065 = vsyncpa [#allocation8], 1
    %s1066 = scalar_lea.sflag [#allocation8], 1
    %1067 = vsyncpa %s1066, 1
    %1068 = vsyncpa [#allocation11], 1
    %1069 = vsyncpa [#allocation9], 1
    %s1070 = scalar_lea.sflag [#allocation9], 1
    %1071 = vsyncpa %s1070, 1
    %1072 = vsyncpa [#allocation14], 1
    %s1073 = scalar_lea.sflag [#allocation14], 1
    %1074 = vsyncpa %s1073, 1

</llo_original>
